<compile_context>
chip_gen: v5e
topology: v5e:2x2
jax: 0.10.0
libtpu: 0.0.40
codegen_flags: <defaults>
</compile_context>

<pallas_src>
import functools

import jax
import jax.numpy as jnp
import numpy as np
from jax.experimental import pallas as pl
from jax.experimental.pallas import tpu as pltpu

EPS = 1e-5


def residual_block_kernel(x_ref, w1_ref, g1_ref, b1_ref, w2_ref, g2_ref, b2_ref,
                          mask_ref, o_ref, *, C, H, W, B):
    """One grid step processes B images stacked on the sublane axis.

    x_ref / o_ref : (1, B*C, H*W) tiles (lane-dense flattened spatial)
    w1_ref/w2_ref : (9, B*C, B*C) block-diagonal per-tap weights (VMEM resident)
    g*_ref/b*_ref : (B*C, 1) affine InstanceNorm params (tiled per image)
    mask_ref      : (9, 1, H*W) f32 0/1 boundary masks, one row per 3x3 tap
    """
    HW = H * W
    inv_hw = 1.0 / float(HW)
    taps = [(ky - 1, kx - 1) for ky in range(3) for kx in range(3)]

    x = x_ref[0].astype(jnp.float32)                       # (B*C, HW)

    # Hoisted once per grid step; all stay VMEM/vreg resident.
    g1 = g1_ref[...]
    b1 = b1_ref[...]
    g2 = g2_ref[...]
    b2 = b2_ref[...]
    masks = [mask_ref[t] for t in range(9)]                # each (1, HW)

    def conv3x3(feat, w_ref):
        # feat: (B*C, HW) f32.  Sum of 9 MXU matmuls, one per tap.
        acc = None
        for t, (dy, dx) in enumerate(taps):
            s = dy * W + dx                                # flattened spatial shift
            if s == 0:
                shifted = feat                             # centre tap: no shift/mask
            else:
                # shifted[p] = feat[(p + s) mod HW]; the mask zeroes every
                # position whose true 2-D neighbour falls outside the image,
                # which also covers all wrap-around positions.  The roll acts
                # per row (lane axis), so stacked images never mix.
                shifted = pltpu.roll(feat, shift=(-s) % HW, axis=1) * masks[t]
            p = jnp.dot(w_ref[t], shifted, preferred_element_type=jnp.float32)
            acc = p if acc is None else acc + p
        return acc

    def instance_norm(y, g, b):
        # Per-row (== per-image, per-channel) statistics over the HW lanes.
        mean = jnp.sum(y, axis=1, keepdims=True) * inv_hw          # (B*C, 1)
        yc = y - mean
        var = jnp.sum(yc * yc, axis=1, keepdims=True) * inv_hw     # biased var
        return yc * jax.lax.rsqrt(var + EPS) * g + b

    # ---- conv1 (MXU) + InstanceNorm1 + ReLU ----
    h = jnp.maximum(instance_norm(conv3x3(x, w1_ref), g1, b1), 0.0)
    # ---- conv2 (MXU) + InstanceNorm2 + residual add ----
    z = instance_norm(conv3x3(h, w2_ref), g2, b2)

    o_ref[0] = (z + x).astype(o_ref.dtype)


def _block_diag_tap_weights(w, B):
    """OIHW (C,C,3,3) -> (9, B*C, B*C) block-diagonal per-tap weights."""
    C = w.shape[0]
    w_taps = jnp.transpose(w, (2, 3, 0, 1)).reshape(9, C, C)       # [t, o, i]
    eye_b = jnp.eye(B, dtype=w.dtype)
    # row = n*C + o, col = m*C + i, value = [n==m] * w[o, i, t]
    return jnp.einsum('nm,tij->tnimj', eye_b, w_taps).reshape(9, B * C, B * C)


def residual_block(x, w1, g1, b1, w2, g2, b2):
    """x: (N, C, H, W) f32; w*: (C, C, 3, 3) OIHW; g*/b*: (C,)."""
    N, C, H, W = x.shape
    assert w1.shape == (C, C, 3, 3) and w2.shape == (C, C, 3, 3)
    HW = H * W

    # Images per grid step: largest divisor of N with B*C <= 64 (fills the
    # sublane axis and amortises the ~0.35us per-step pipeline overhead while
    # keeping the block-diagonal MXU waste and VMEM footprint small).
    B = 1
    for cand in range(N, 0, -1):
        if N % cand == 0 and cand * C <= 64:
            B = cand
            break
    G = N // B
    BC = B * C

    # Lane-dense layout: flatten spatial to the last dim, stack B images on the
    # sublane axis (pure contiguous reshape, no transpose).
    x_st = x.reshape(G, BC, HW)

    # Block-diagonal per-tap weights and per-image-tiled affine params.
    w1_bd = _block_diag_tap_weights(w1, B)
    w2_bd = _block_diag_tap_weights(w2, B)
    g1t = jnp.tile(g1, B).reshape(BC, 1)
    b1t = jnp.tile(b1, B).reshape(BC, 1)
    g2t = jnp.tile(g2, B).reshape(BC, 1)
    b2t = jnp.tile(b2, B).reshape(BC, 1)

    # Static 0/1 boundary masks for the 9 taps (computed host-side with numpy).
    rows = np.arange(HW) // W
    cols = np.arange(HW) % W
    mask_list = []
    for ky in range(3):
        for kx in range(3):
            dy, dx = ky - 1, kx - 1
            m = ((rows + dy >= 0) & (rows + dy < H) &
                 (cols + dx >= 0) & (cols + dx < W))
            mask_list.append(m.astype(np.float32))
    mask_arr = jnp.asarray(np.stack(mask_list, axis=0).reshape(9, 1, HW))

    kernel = functools.partial(residual_block_kernel, C=C, H=H, W=W, B=B)

    grid_spec = pltpu.PrefetchScalarGridSpec(
        num_scalar_prefetch=0,
        grid=(G,),
        in_specs=[
            pl.BlockSpec((1, BC, HW), lambda g: (g, 0, 0)),      # x (stacked)
            pl.BlockSpec((9, BC, BC), lambda g: (0, 0, 0)),      # w1 (resident)
            pl.BlockSpec((BC, 1), lambda g: (0, 0)),             # gamma1
            pl.BlockSpec((BC, 1), lambda g: (0, 0)),             # beta1
            pl.BlockSpec((9, BC, BC), lambda g: (0, 0, 0)),      # w2
            pl.BlockSpec((BC, 1), lambda g: (0, 0)),             # gamma2
            pl.BlockSpec((BC, 1), lambda g: (0, 0)),             # beta2
            pl.BlockSpec((9, 1, HW), lambda g: (0, 0, 0)),       # tap masks
        ],
        out_specs=pl.BlockSpec((1, BC, HW), lambda g: (g, 0, 0)),
    )

    out_st = pl.pallas_call(
        kernel,
        out_shape=jax.ShapeDtypeStruct((G, BC, HW), x.dtype),
        grid_spec=grid_spec,
        compiler_params=pltpu.CompilerParams(
            dimension_semantics=("parallel",)),
    )(x_st, w1_bd, g1t, b1t, w2_bd, g2t, b2t, mask_arr)

    return out_st.reshape(N, C, H, W)


def residual_block_reference(x, w1, g1, b1, w2, g2, b2):
    """Pure-JAX reference matching PyTorch ResidualBlock.forward (train mode)."""
    def conv(t, w):
        return jax.lax.conv_general_dilated(
            t, w, window_strides=(1, 1), padding=((1, 1), (1, 1)),
            dimension_numbers=("NCHW", "OIHW", "NCHW"))

    def inorm(t, g, b):
        mean = jnp.mean(t, axis=(2, 3), keepdims=True)
        var = jnp.mean((t - mean) ** 2, axis=(2, 3), keepdims=True)
        return ((t - mean) * jax.lax.rsqrt(var + EPS)
                * g[None, :, None, None] + b[None, :, None, None])

    h = jax.nn.relu(inorm(conv(x, w1), g1, b1))
    return inorm(conv(h, w2), g2, b2) + x


if __name__ == "__main__":
    N, C, H, W = 2, 4, 16, 16  # in_channels == out_channels (residual add requires it)

    key = jax.random.PRNGKey(0)
    kx, kw1, kw2, kg1, kb1, kg2, kb2 = jax.random.split(key, 7)

    x = jax.random.normal(kx, (N, C, H, W), dtype=jnp.float32)
    w1 = jax.random.normal(kw1, (C, C, 3, 3), dtype=jnp.float32) * 0.2
    w2 = jax.random.normal(kw2, (C, C, 3, 3), dtype=jnp.float32) * 0.2
    # PyTorch inits affine InstanceNorm to weight=1, bias=0; perturb slightly
    # (deterministically) so the affine path is actually exercised.
    g1 = 1.0 + 0.1 * jax.random.normal(kg1, (C,), dtype=jnp.float32)
    b1 = 0.1 * jax.random.normal(kb1, (C,), dtype=jnp.float32)
    g2 = 1.0 + 0.1 * jax.random.normal(kg2, (C,), dtype=jnp.float32)
    b2 = 0.1 * jax.random.normal(kb2, (C,), dtype=jnp.float32)

    out = residual_block(x, w1, g1, b1, w2, g2, b2)
    out = jax.block_until_ready(out)

    ref = jax.block_until_ready(residual_block_reference(x, w1, g1, b1, w2, g2, b2))
    np.testing.assert_allclose(np.asarray(out), np.asarray(ref), rtol=1e-3, atol=1e-3)

    print("KERNEL_OK")
</pallas_src>

<mosaic_0001>
module attributes {stable_mosaic.version = 11 : i64} {
  func.func @residual_block_kernel(%arg0: i32, %arg1: memref<1x8x256xf32, #tpu.memory_space<vmem>>, %arg2: memref<9x8x8xf32, #tpu.memory_space<vmem>>, %arg3: memref<8x1xf32, #tpu.memory_space<vmem>>, %arg4: memref<8x1xf32, #tpu.memory_space<vmem>>, %arg5: memref<9x8x8xf32, #tpu.memory_space<vmem>>, %arg6: memref<8x1xf32, #tpu.memory_space<vmem>>, %arg7: memref<8x1xf32, #tpu.memory_space<vmem>>, %arg8: memref<9x1x256xf32, #tpu.memory_space<vmem>>, %arg9: memref<1x8x256xf32, #tpu.memory_space<vmem>>) attributes {dimension_semantics = [#tpu.dimension_semantics<parallel>], iteration_bounds = array<i64: 1>, scalar_prefetch = 0 : i64, scratch_operands = 0 : i64, tpu.core_type = #tpu.core_type<tc>, window_params = [{transform_indices = @transform_0, window_bounds = array<i64: 1, 8, 256>}, {pipeline_mode = #tpu.pipeline_mode<synchronous>, transform_indices = @transform_1, window_bounds = array<i64: 9, 8, 8>}, {pipeline_mode = #tpu.pipeline_mode<synchronous>, transform_indices = @transform_2, window_bounds = array<i64: 8, 1>}, {pipeline_mode = #tpu.pipeline_mode<synchronous>, transform_indices = @transform_3, window_bounds = array<i64: 8, 1>}, {pipeline_mode = #tpu.pipeline_mode<synchronous>, transform_indices = @transform_4, window_bounds = array<i64: 9, 8, 8>}, {pipeline_mode = #tpu.pipeline_mode<synchronous>, transform_indices = @transform_5, window_bounds = array<i64: 8, 1>}, {pipeline_mode = #tpu.pipeline_mode<synchronous>, transform_indices = @transform_6, window_bounds = array<i64: 8, 1>}, {pipeline_mode = #tpu.pipeline_mode<synchronous>, transform_indices = @transform_7, window_bounds = array<i64: 9, 1, 256>}, {transform_indices = @transform_8, window_bounds = array<i64: 1, 8, 256>}]} {
    %c0 = arith.constant 0 : index
    %c0_0 = arith.constant 0 : index
    %c0_1 = arith.constant 0 : index
    %0 = vector.load %arg1[%c0, %c0_0, %c0_1] : memref<1x8x256xf32, #tpu.memory_space<vmem>>, vector<1x8x256xf32>
    %1 = vector.shape_cast %0 : vector<1x8x256xf32> to vector<8x256xf32>
    %c0_2 = arith.constant 0 : index
    %c0_3 = arith.constant 0 : index
    %2 = vector.load %arg3[%c0_2, %c0_3] : memref<8x1xf32, #tpu.memory_space<vmem>>, vector<8x1xf32>
    %c0_4 = arith.constant 0 : index
    %c0_5 = arith.constant 0 : index
    %3 = vector.load %arg4[%c0_4, %c0_5] : memref<8x1xf32, #tpu.memory_space<vmem>>, vector<8x1xf32>
    %c0_6 = arith.constant 0 : index
    %c0_7 = arith.constant 0 : index
    %4 = vector.load %arg6[%c0_6, %c0_7] : memref<8x1xf32, #tpu.memory_space<vmem>>, vector<8x1xf32>
    %c0_8 = arith.constant 0 : index
    %c0_9 = arith.constant 0 : index
    %5 = vector.load %arg7[%c0_8, %c0_9] : memref<8x1xf32, #tpu.memory_space<vmem>>, vector<8x1xf32>
    %c0_10 = arith.constant 0 : index
    %c0_11 = arith.constant 0 : index
    %c0_12 = arith.constant 0 : index
    %6 = vector.load %arg8[%c0_10, %c0_11, %c0_12] : memref<9x1x256xf32, #tpu.memory_space<vmem>>, vector<1x1x256xf32>
    %7 = vector.shape_cast %6 : vector<1x1x256xf32> to vector<1x256xf32>
    %c1 = arith.constant 1 : index
    %c0_13 = arith.constant 0 : index
    %c0_14 = arith.constant 0 : index
    %8 = vector.load %arg8[%c1, %c0_13, %c0_14] : memref<9x1x256xf32, #tpu.memory_space<vmem>>, vector<1x1x256xf32>
    %9 = vector.shape_cast %8 : vector<1x1x256xf32> to vector<1x256xf32>
    %c2 = arith.constant 2 : index
    %c0_15 = arith.constant 0 : index
    %c0_16 = arith.constant 0 : index
    %10 = vector.load %arg8[%c2, %c0_15, %c0_16] : memref<9x1x256xf32, #tpu.memory_space<vmem>>, vector<1x1x256xf32>
    %11 = vector.shape_cast %10 : vector<1x1x256xf32> to vector<1x256xf32>
    %c3 = arith.constant 3 : index
    %c0_17 = arith.constant 0 : index
    %c0_18 = arith.constant 0 : index
    %12 = vector.load %arg8[%c3, %c0_17, %c0_18] : memref<9x1x256xf32, #tpu.memory_space<vmem>>, vector<1x1x256xf32>
    %13 = vector.shape_cast %12 : vector<1x1x256xf32> to vector<1x256xf32>
    %c5 = arith.constant 5 : index
    %c0_19 = arith.constant 0 : index
    %c0_20 = arith.constant 0 : index
    %14 = vector.load %arg8[%c5, %c0_19, %c0_20] : memref<9x1x256xf32, #tpu.memory_space<vmem>>, vector<1x1x256xf32>
    %15 = vector.shape_cast %14 : vector<1x1x256xf32> to vector<1x256xf32>
    %c6 = arith.constant 6 : index
    %c0_21 = arith.constant 0 : index
    %c0_22 = arith.constant 0 : index
    %16 = vector.load %arg8[%c6, %c0_21, %c0_22] : memref<9x1x256xf32, #tpu.memory_space<vmem>>, vector<1x1x256xf32>
    %17 = vector.shape_cast %16 : vector<1x1x256xf32> to vector<1x256xf32>
    %c7 = arith.constant 7 : index
    %c0_23 = arith.constant 0 : index
    %c0_24 = arith.constant 0 : index
    %18 = vector.load %arg8[%c7, %c0_23, %c0_24] : memref<9x1x256xf32, #tpu.memory_space<vmem>>, vector<1x1x256xf32>
    %19 = vector.shape_cast %18 : vector<1x1x256xf32> to vector<1x256xf32>
    %c8 = arith.constant 8 : index
    %c0_25 = arith.constant 0 : index
    %c0_26 = arith.constant 0 : index
    %20 = vector.load %arg8[%c8, %c0_25, %c0_26] : memref<9x1x256xf32, #tpu.memory_space<vmem>>, vector<1x1x256xf32>
    %21 = vector.shape_cast %20 : vector<1x1x256xf32> to vector<1x256xf32>
    %c17_i32 = arith.constant 17 : i32
    %22 = tpu.dynamic_rotate %1 by %c17_i32 dim 1 : vector<8x256xf32>, i32 -> vector<8x256xf32>
    %23 = vector.broadcast %7 : vector<1x256xf32> to vector<8x256xf32>
    %24 = arith.mulf %22, %23 : vector<8x256xf32>
    %c0_27 = arith.constant 0 : index
    %c0_28 = arith.constant 0 : index
    %c0_29 = arith.constant 0 : index
    %25 = vector.load %arg2[%c0_27, %c0_28, %c0_29] : memref<9x8x8xf32, #tpu.memory_space<vmem>>, vector<1x8x8xf32>
    %26 = vector.shape_cast %25 : vector<1x8x8xf32> to vector<8x8xf32>
    %cst = arith.constant dense<0.000000e+00> : vector<8x256xf32>
    %27 = tpu.matmul %26, %24, %cst {dimension_numbers = #tpu.dot_dimension_numbers<[1], [0], [0], [1], [0, 0, 1, 1], [], []>} : vector<8x8xf32>, vector<8x256xf32>, vector<8x256xf32> -> vector<8x256xf32>
    %c16_i32 = arith.constant 16 : i32
    %28 = tpu.dynamic_rotate %1 by %c16_i32 dim 1 : vector<8x256xf32>, i32 -> vector<8x256xf32>
    %29 = vector.broadcast %9 : vector<1x256xf32> to vector<8x256xf32>
    %30 = arith.mulf %28, %29 : vector<8x256xf32>
    %c1_30 = arith.constant 1 : index
    %c0_31 = arith.constant 0 : index
    %c0_32 = arith.constant 0 : index
    %31 = vector.load %arg2[%c1_30, %c0_31, %c0_32] : memref<9x8x8xf32, #tpu.memory_space<vmem>>, vector<1x8x8xf32>
    %32 = vector.shape_cast %31 : vector<1x8x8xf32> to vector<8x8xf32>
    %cst_33 = arith.constant dense<0.000000e+00> : vector<8x256xf32>
    %33 = tpu.matmul %32, %30, %cst_33 {dimension_numbers = #tpu.dot_dimension_numbers<[1], [0], [0], [1], [0, 0, 1, 1], [], []>} : vector<8x8xf32>, vector<8x256xf32>, vector<8x256xf32> -> vector<8x256xf32>
    %34 = arith.addf %27, %33 : vector<8x256xf32>
    %c15_i32 = arith.constant 15 : i32
    %35 = tpu.dynamic_rotate %1 by %c15_i32 dim 1 : vector<8x256xf32>, i32 -> vector<8x256xf32>
    %36 = vector.broadcast %11 : vector<1x256xf32> to vector<8x256xf32>
    %37 = arith.mulf %35, %36 : vector<8x256xf32>
    %c2_34 = arith.constant 2 : index
    %c0_35 = arith.constant 0 : index
    %c0_36 = arith.constant 0 : index
    %38 = vector.load %arg2[%c2_34, %c0_35, %c0_36] : memref<9x8x8xf32, #tpu.memory_space<vmem>>, vector<1x8x8xf32>
    %39 = vector.shape_cast %38 : vector<1x8x8xf32> to vector<8x8xf32>
    %cst_37 = arith.constant dense<0.000000e+00> : vector<8x256xf32>
    %40 = tpu.matmul %39, %37, %cst_37 {dimension_numbers = #tpu.dot_dimension_numbers<[1], [0], [0], [1], [0, 0, 1, 1], [], []>} : vector<8x8xf32>, vector<8x256xf32>, vector<8x256xf32> -> vector<8x256xf32>
    %41 = arith.addf %34, %40 : vector<8x256xf32>
    %c1_i32 = arith.constant 1 : i32
    %42 = tpu.dynamic_rotate %1 by %c1_i32 dim 1 : vector<8x256xf32>, i32 -> vector<8x256xf32>
    %43 = vector.broadcast %13 : vector<1x256xf32> to vector<8x256xf32>
    %44 = arith.mulf %42, %43 : vector<8x256xf32>
    %c3_38 = arith.constant 3 : index
    %c0_39 = arith.constant 0 : index
    %c0_40 = arith.constant 0 : index
    %45 = vector.load %arg2[%c3_38, %c0_39, %c0_40] : memref<9x8x8xf32, #tpu.memory_space<vmem>>, vector<1x8x8xf32>
    %46 = vector.shape_cast %45 : vector<1x8x8xf32> to vector<8x8xf32>
    %cst_41 = arith.constant dense<0.000000e+00> : vector<8x256xf32>
    %47 = tpu.matmul %46, %44, %cst_41 {dimension_numbers = #tpu.dot_dimension_numbers<[1], [0], [0], [1], [0, 0, 1, 1], [], []>} : vector<8x8xf32>, vector<8x256xf32>, vector<8x256xf32> -> vector<8x256xf32>
    %48 = arith.addf %41, %47 : vector<8x256xf32>
    %c4 = arith.constant 4 : index
    %c0_42 = arith.constant 0 : index
    %c0_43 = arith.constant 0 : index
    %49 = vector.load %arg2[%c4, %c0_42, %c0_43] : memref<9x8x8xf32, #tpu.memory_space<vmem>>, vector<1x8x8xf32>
    %50 = vector.shape_cast %49 : vector<1x8x8xf32> to vector<8x8xf32>
    %cst_44 = arith.constant dense<0.000000e+00> : vector<8x256xf32>
    %51 = tpu.matmul %50, %1, %cst_44 {dimension_numbers = #tpu.dot_dimension_numbers<[1], [0], [0], [1], [0, 0, 1, 1], [], []>} : vector<8x8xf32>, vector<8x256xf32>, vector<8x256xf32> -> vector<8x256xf32>
    %52 = arith.addf %48, %51 : vector<8x256xf32>
    %c255_i32 = arith.constant 255 : i32
    %53 = tpu.dynamic_rotate %1 by %c255_i32 dim 1 : vector<8x256xf32>, i32 -> vector<8x256xf32>
    %54 = vector.broadcast %15 : vector<1x256xf32> to vector<8x256xf32>
    %55 = arith.mulf %53, %54 : vector<8x256xf32>
    %c5_45 = arith.constant 5 : index
    %c0_46 = arith.constant 0 : index
    %c0_47 = arith.constant 0 : index
    %56 = vector.load %arg2[%c5_45, %c0_46, %c0_47] : memref<9x8x8xf32, #tpu.memory_space<vmem>>, vector<1x8x8xf32>
    %57 = vector.shape_cast %56 : vector<1x8x8xf32> to vector<8x8xf32>
    %cst_48 = arith.constant dense<0.000000e+00> : vector<8x256xf32>
    %58 = tpu.matmul %57, %55, %cst_48 {dimension_numbers = #tpu.dot_dimension_numbers<[1], [0], [0], [1], [0, 0, 1, 1], [], []>} : vector<8x8xf32>, vector<8x256xf32>, vector<8x256xf32> -> vector<8x256xf32>
    %59 = arith.addf %52, %58 : vector<8x256xf32>
    %c241_i32 = arith.constant 241 : i32
    %60 = tpu.dynamic_rotate %1 by %c241_i32 dim 1 : vector<8x256xf32>, i32 -> vector<8x256xf32>
    %61 = vector.broadcast %17 : vector<1x256xf32> to vector<8x256xf32>
    %62 = arith.mulf %60, %61 : vector<8x256xf32>
    %c6_49 = arith.constant 6 : index
    %c0_50 = arith.constant 0 : index
    %c0_51 = arith.constant 0 : index
    %63 = vector.load %arg2[%c6_49, %c0_50, %c0_51] : memref<9x8x8xf32, #tpu.memory_space<vmem>>, vector<1x8x8xf32>
    %64 = vector.shape_cast %63 : vector<1x8x8xf32> to vector<8x8xf32>
    %cst_52 = arith.constant dense<0.000000e+00> : vector<8x256xf32>
    %65 = tpu.matmul %64, %62, %cst_52 {dimension_numbers = #tpu.dot_dimension_numbers<[1], [0], [0], [1], [0, 0, 1, 1], [], []>} : vector<8x8xf32>, vector<8x256xf32>, vector<8x256xf32> -> vector<8x256xf32>
    %66 = arith.addf %59, %65 : vector<8x256xf32>
    %c240_i32 = arith.constant 240 : i32
    %67 = tpu.dynamic_rotate %1 by %c240_i32 dim 1 : vector<8x256xf32>, i32 -> vector<8x256xf32>
    %68 = vector.broadcast %19 : vector<1x256xf32> to vector<8x256xf32>
    %69 = arith.mulf %67, %68 : vector<8x256xf32>
    %c7_53 = arith.constant 7 : index
    %c0_54 = arith.constant 0 : index
    %c0_55 = arith.constant 0 : index
    %70 = vector.load %arg2[%c7_53, %c0_54, %c0_55] : memref<9x8x8xf32, #tpu.memory_space<vmem>>, vector<1x8x8xf32>
    %71 = vector.shape_cast %70 : vector<1x8x8xf32> to vector<8x8xf32>
    %cst_56 = arith.constant dense<0.000000e+00> : vector<8x256xf32>
    %72 = tpu.matmul %71, %69, %cst_56 {dimension_numbers = #tpu.dot_dimension_numbers<[1], [0], [0], [1], [0, 0, 1, 1], [], []>} : vector<8x8xf32>, vector<8x256xf32>, vector<8x256xf32> -> vector<8x256xf32>
    %73 = arith.addf %66, %72 : vector<8x256xf32>
    %c239_i32 = arith.constant 239 : i32
    %74 = tpu.dynamic_rotate %1 by %c239_i32 dim 1 : vector<8x256xf32>, i32 -> vector<8x256xf32>
    %75 = vector.broadcast %21 : vector<1x256xf32> to vector<8x256xf32>
    %76 = arith.mulf %74, %75 : vector<8x256xf32>
    %c8_57 = arith.constant 8 : index
    %c0_58 = arith.constant 0 : index
    %c0_59 = arith.constant 0 : index
    %77 = vector.load %arg2[%c8_57, %c0_58, %c0_59] : memref<9x8x8xf32, #tpu.memory_space<vmem>>, vector<1x8x8xf32>
    %78 = vector.shape_cast %77 : vector<1x8x8xf32> to vector<8x8xf32>
    %cst_60 = arith.constant dense<0.000000e+00> : vector<8x256xf32>
    %79 = tpu.matmul %78, %76, %cst_60 {dimension_numbers = #tpu.dot_dimension_numbers<[1], [0], [0], [1], [0, 0, 1, 1], [], []>} : vector<8x8xf32>, vector<8x256xf32>, vector<8x256xf32> -> vector<8x256xf32>
    %80 = arith.addf %73, %79 : vector<8x256xf32>
    %cst_61 = arith.constant dense<0.000000e+00> : vector<8xf32>
    %81 = vector.multi_reduction <add>, %80, %cst_61 [1] : vector<8x256xf32> to vector<8xf32>
    %82 = vector.shape_cast %81 : vector<8xf32> to vector<8x1xf32>
    %cst_62 = arith.constant 3.906250e-03 : f32
    %83 = vector.broadcast %cst_62 : f32 to vector<8x1xf32>
    %84 = arith.mulf %82, %83 : vector<8x1xf32>
    %85 = vector.broadcast %84 : vector<8x1xf32> to vector<8x256xf32>
    %86 = arith.subf %80, %85 : vector<8x256xf32>
    %87 = arith.mulf %86, %86 : vector<8x256xf32>
    %cst_63 = arith.constant dense<0.000000e+00> : vector<8xf32>
    %88 = vector.multi_reduction <add>, %87, %cst_63 [1] : vector<8x256xf32> to vector<8xf32>
    %89 = vector.shape_cast %88 : vector<8xf32> to vector<8x1xf32>
    %cst_64 = arith.constant 3.906250e-03 : f32
    %90 = vector.broadcast %cst_64 : f32 to vector<8x1xf32>
    %91 = arith.mulf %89, %90 : vector<8x1xf32>
    %cst_65 = arith.constant 9.99999974E-6 : f32
    %92 = vector.broadcast %cst_65 : f32 to vector<8x1xf32>
    %93 = arith.addf %91, %92 : vector<8x1xf32>
    %94 = math.rsqrt %93 : vector<8x1xf32>
    %95 = vector.broadcast %94 : vector<8x1xf32> to vector<8x256xf32>
    %96 = arith.mulf %86, %95 : vector<8x256xf32>
    %97 = vector.broadcast %2 : vector<8x1xf32> to vector<8x256xf32>
    %98 = arith.mulf %96, %97 : vector<8x256xf32>
    %99 = vector.broadcast %3 : vector<8x1xf32> to vector<8x256xf32>
    %100 = arith.addf %98, %99 : vector<8x256xf32>
    %cst_66 = arith.constant 0.000000e+00 : f32
    %101 = vector.broadcast %cst_66 : f32 to vector<8x256xf32>
    %102 = arith.maximumf %100, %101 : vector<8x256xf32>
    %c17_i32_67 = arith.constant 17 : i32
    %103 = tpu.dynamic_rotate %102 by %c17_i32_67 dim 1 : vector<8x256xf32>, i32 -> vector<8x256xf32>
    %104 = vector.broadcast %7 : vector<1x256xf32> to vector<8x256xf32>
    %105 = arith.mulf %103, %104 : vector<8x256xf32>
    %c0_68 = arith.constant 0 : index
    %c0_69 = arith.constant 0 : index
    %c0_70 = arith.constant 0 : index
    %106 = vector.load %arg5[%c0_68, %c0_69, %c0_70] : memref<9x8x8xf32, #tpu.memory_space<vmem>>, vector<1x8x8xf32>
    %107 = vector.shape_cast %106 : vector<1x8x8xf32> to vector<8x8xf32>
    %cst_71 = arith.constant dense<0.000000e+00> : vector<8x256xf32>
    %108 = tpu.matmul %107, %105, %cst_71 {dimension_numbers = #tpu.dot_dimension_numbers<[1], [0], [0], [1], [0, 0, 1, 1], [], []>} : vector<8x8xf32>, vector<8x256xf32>, vector<8x256xf32> -> vector<8x256xf32>
    %c16_i32_72 = arith.constant 16 : i32
    %109 = tpu.dynamic_rotate %102 by %c16_i32_72 dim 1 : vector<8x256xf32>, i32 -> vector<8x256xf32>
    %110 = vector.broadcast %9 : vector<1x256xf32> to vector<8x256xf32>
    %111 = arith.mulf %109, %110 : vector<8x256xf32>
    %c1_73 = arith.constant 1 : index
    %c0_74 = arith.constant 0 : index
    %c0_75 = arith.constant 0 : index
    %112 = vector.load %arg5[%c1_73, %c0_74, %c0_75] : memref<9x8x8xf32, #tpu.memory_space<vmem>>, vector<1x8x8xf32>
    %113 = vector.shape_cast %112 : vector<1x8x8xf32> to vector<8x8xf32>
    %cst_76 = arith.constant dense<0.000000e+00> : vector<8x256xf32>
    %114 = tpu.matmul %113, %111, %cst_76 {dimension_numbers = #tpu.dot_dimension_numbers<[1], [0], [0], [1], [0, 0, 1, 1], [], []>} : vector<8x8xf32>, vector<8x256xf32>, vector<8x256xf32> -> vector<8x256xf32>
    %115 = arith.addf %108, %114 : vector<8x256xf32>
    %c15_i32_77 = arith.constant 15 : i32
    %116 = tpu.dynamic_rotate %102 by %c15_i32_77 dim 1 : vector<8x256xf32>, i32 -> vector<8x256xf32>
    %117 = vector.broadcast %11 : vector<1x256xf32> to vector<8x256xf32>
    %118 = arith.mulf %116, %117 : vector<8x256xf32>
    %c2_78 = arith.constant 2 : index
    %c0_79 = arith.constant 0 : index
    %c0_80 = arith.constant 0 : index
    %119 = vector.load %arg5[%c2_78, %c0_79, %c0_80] : memref<9x8x8xf32, #tpu.memory_space<vmem>>, vector<1x8x8xf32>
    %120 = vector.shape_cast %119 : vector<1x8x8xf32> to vector<8x8xf32>
    %cst_81 = arith.constant dense<0.000000e+00> : vector<8x256xf32>
    %121 = tpu.matmul %120, %118, %cst_81 {dimension_numbers = #tpu.dot_dimension_numbers<[1], [0], [0], [1], [0, 0, 1, 1], [], []>} : vector<8x8xf32>, vector<8x256xf32>, vector<8x256xf32> -> vector<8x256xf32>
    %122 = arith.addf %115, %121 : vector<8x256xf32>
    %c1_i32_82 = arith.constant 1 : i32
    %123 = tpu.dynamic_rotate %102 by %c1_i32_82 dim 1 : vector<8x256xf32>, i32 -> vector<8x256xf32>
    %124 = vector.broadcast %13 : vector<1x256xf32> to vector<8x256xf32>
    %125 = arith.mulf %123, %124 : vector<8x256xf32>
    %c3_83 = arith.constant 3 : index
    %c0_84 = arith.constant 0 : index
    %c0_85 = arith.constant 0 : index
    %126 = vector.load %arg5[%c3_83, %c0_84, %c0_85] : memref<9x8x8xf32, #tpu.memory_space<vmem>>, vector<1x8x8xf32>
    %127 = vector.shape_cast %126 : vector<1x8x8xf32> to vector<8x8xf32>
    %cst_86 = arith.constant dense<0.000000e+00> : vector<8x256xf32>
    %128 = tpu.matmul %127, %125, %cst_86 {dimension_numbers = #tpu.dot_dimension_numbers<[1], [0], [0], [1], [0, 0, 1, 1], [], []>} : vector<8x8xf32>, vector<8x256xf32>, vector<8x256xf32> -> vector<8x256xf32>
    %129 = arith.addf %122, %128 : vector<8x256xf32>
    %c4_87 = arith.constant 4 : index
    %c0_88 = arith.constant 0 : index
    %c0_89 = arith.constant 0 : index
    %130 = vector.load %arg5[%c4_87, %c0_88, %c0_89] : memref<9x8x8xf32, #tpu.memory_space<vmem>>, vector<1x8x8xf32>
    %131 = vector.shape_cast %130 : vector<1x8x8xf32> to vector<8x8xf32>
    %cst_90 = arith.constant dense<0.000000e+00> : vector<8x256xf32>
    %132 = tpu.matmul %131, %102, %cst_90 {dimension_numbers = #tpu.dot_dimension_numbers<[1], [0], [0], [1], [0, 0, 1, 1], [], []>} : vector<8x8xf32>, vector<8x256xf32>, vector<8x256xf32> -> vector<8x256xf32>
    %133 = arith.addf %129, %132 : vector<8x256xf32>
    %c255_i32_91 = arith.constant 255 : i32
    %134 = tpu.dynamic_rotate %102 by %c255_i32_91 dim 1 : vector<8x256xf32>, i32 -> vector<8x256xf32>
    %135 = vector.broadcast %15 : vector<1x256xf32> to vector<8x256xf32>
    %136 = arith.mulf %134, %135 : vector<8x256xf32>
    %c5_92 = arith.constant 5 : index
    %c0_93 = arith.constant 0 : index
    %c0_94 = arith.constant 0 : index
    %137 = vector.load %arg5[%c5_92, %c0_93, %c0_94] : memref<9x8x8xf32, #tpu.memory_space<vmem>>, vector<1x8x8xf32>
    %138 = vector.shape_cast %137 : vector<1x8x8xf32> to vector<8x8xf32>
    %cst_95 = arith.constant dense<0.000000e+00> : vector<8x256xf32>
    %139 = tpu.matmul %138, %136, %cst_95 {dimension_numbers = #tpu.dot_dimension_numbers<[1], [0], [0], [1], [0, 0, 1, 1], [], []>} : vector<8x8xf32>, vector<8x256xf32>, vector<8x256xf32> -> vector<8x256xf32>
    %140 = arith.addf %133, %139 : vector<8x256xf32>
    %c241_i32_96 = arith.constant 241 : i32
    %141 = tpu.dynamic_rotate %102 by %c241_i32_96 dim 1 : vector<8x256xf32>, i32 -> vector<8x256xf32>
    %142 = vector.broadcast %17 : vector<1x256xf32> to vector<8x256xf32>
    %143 = arith.mulf %141, %142 : vector<8x256xf32>
    %c6_97 = arith.constant 6 : index
    %c0_98 = arith.constant 0 : index
    %c0_99 = arith.constant 0 : index
    %144 = vector.load %arg5[%c6_97, %c0_98, %c0_99] : memref<9x8x8xf32, #tpu.memory_space<vmem>>, vector<1x8x8xf32>
    %145 = vector.shape_cast %144 : vector<1x8x8xf32> to vector<8x8xf32>
    %cst_100 = arith.constant dense<0.000000e+00> : vector<8x256xf32>
    %146 = tpu.matmul %145, %143, %cst_100 {dimension_numbers = #tpu.dot_dimension_numbers<[1], [0], [0], [1], [0, 0, 1, 1], [], []>} : vector<8x8xf32>, vector<8x256xf32>, vector<8x256xf32> -> vector<8x256xf32>
    %147 = arith.addf %140, %146 : vector<8x256xf32>
    %c240_i32_101 = arith.constant 240 : i32
    %148 = tpu.dynamic_rotate %102 by %c240_i32_101 dim 1 : vector<8x256xf32>, i32 -> vector<8x256xf32>
    %149 = vector.broadcast %19 : vector<1x256xf32> to vector<8x256xf32>
    %150 = arith.mulf %148, %149 : vector<8x256xf32>
    %c7_102 = arith.constant 7 : index
    %c0_103 = arith.constant 0 : index
    %c0_104 = arith.constant 0 : index
    %151 = vector.load %arg5[%c7_102, %c0_103, %c0_104] : memref<9x8x8xf32, #tpu.memory_space<vmem>>, vector<1x8x8xf32>
    %152 = vector.shape_cast %151 : vector<1x8x8xf32> to vector<8x8xf32>
    %cst_105 = arith.constant dense<0.000000e+00> : vector<8x256xf32>
    %153 = tpu.matmul %152, %150, %cst_105 {dimension_numbers = #tpu.dot_dimension_numbers<[1], [0], [0], [1], [0, 0, 1, 1], [], []>} : vector<8x8xf32>, vector<8x256xf32>, vector<8x256xf32> -> vector<8x256xf32>
    %154 = arith.addf %147, %153 : vector<8x256xf32>
    %c239_i32_106 = arith.constant 239 : i32
    %155 = tpu.dynamic_rotate %102 by %c239_i32_106 dim 1 : vector<8x256xf32>, i32 -> vector<8x256xf32>
    %156 = vector.broadcast %21 : vector<1x256xf32> to vector<8x256xf32>
    %157 = arith.mulf %155, %156 : vector<8x256xf32>
    %c8_107 = arith.constant 8 : index
    %c0_108 = arith.constant 0 : index
    %c0_109 = arith.constant 0 : index
    %158 = vector.load %arg5[%c8_107, %c0_108, %c0_109] : memref<9x8x8xf32, #tpu.memory_space<vmem>>, vector<1x8x8xf32>
    %159 = vector.shape_cast %158 : vector<1x8x8xf32> to vector<8x8xf32>
    %cst_110 = arith.constant dense<0.000000e+00> : vector<8x256xf32>
    %160 = tpu.matmul %159, %157, %cst_110 {dimension_numbers = #tpu.dot_dimension_numbers<[1], [0], [0], [1], [0, 0, 1, 1], [], []>} : vector<8x8xf32>, vector<8x256xf32>, vector<8x256xf32> -> vector<8x256xf32>
    %161 = arith.addf %154, %160 : vector<8x256xf32>
    %cst_111 = arith.constant dense<0.000000e+00> : vector<8xf32>
    %162 = vector.multi_reduction <add>, %161, %cst_111 [1] : vector<8x256xf32> to vector<8xf32>
    %163 = vector.shape_cast %162 : vector<8xf32> to vector<8x1xf32>
    %cst_112 = arith.constant 3.906250e-03 : f32
    %164 = vector.broadcast %cst_112 : f32 to vector<8x1xf32>
    %165 = arith.mulf %163, %164 : vector<8x1xf32>
    %166 = vector.broadcast %165 : vector<8x1xf32> to vector<8x256xf32>
    %167 = arith.subf %161, %166 : vector<8x256xf32>
    %168 = arith.mulf %167, %167 : vector<8x256xf32>
    %cst_113 = arith.constant dense<0.000000e+00> : vector<8xf32>
    %169 = vector.multi_reduction <add>, %168, %cst_113 [1] : vector<8x256xf32> to vector<8xf32>
    %170 = vector.shape_cast %169 : vector<8xf32> to vector<8x1xf32>
    %cst_114 = arith.constant 3.906250e-03 : f32
    %171 = vector.broadcast %cst_114 : f32 to vector<8x1xf32>
    %172 = arith.mulf %170, %171 : vector<8x1xf32>
    %cst_115 = arith.constant 9.99999974E-6 : f32
    %173 = vector.broadcast %cst_115 : f32 to vector<8x1xf32>
    %174 = arith.addf %172, %173 : vector<8x1xf32>
    %175 = math.rsqrt %174 : vector<8x1xf32>
    %176 = vector.broadcast %175 : vector<8x1xf32> to vector<8x256xf32>
    %177 = arith.mulf %167, %176 : vector<8x256xf32>
    %178 = vector.broadcast %4 : vector<8x1xf32> to vector<8x256xf32>
    %179 = arith.mulf %177, %178 : vector<8x256xf32>
    %180 = vector.broadcast %5 : vector<8x1xf32> to vector<8x256xf32>
    %181 = arith.addf %179, %180 : vector<8x256xf32>
    %182 = arith.addf %181, %1 : vector<8x256xf32>
    %c0_116 = arith.constant 0 : index
    %c0_117 = arith.constant 0 : index
    %c0_118 = arith.constant 0 : index
    %183 = vector.load %arg9[%c0_116, %c0_117, %c0_118] : memref<1x8x256xf32, #tpu.memory_space<vmem>>, vector<1x8x256xf32>
    %184 = vector.shape_cast %183 : vector<1x8x256xf32> to vector<8x256xf32>
    %185 = vector.shape_cast %182 : vector<8x256xf32> to vector<1x8x256xf32>
    tpu.vector_store %arg9[%c0_116, %c0_117, %c0_118], %185 {strides = array<i32>} : memref<1x8x256xf32, #tpu.memory_space<vmem>>, vector<1x8x256xf32>,
    return
  }
  func.func @transform_0(%arg0: i32) -> (i32, i32, i32) {
    %c0_i32 = arith.constant 0 : i32
    %c0_i32_0 = arith.constant 0 : i32
    %c0_i32_1 = arith.constant 0 : i32
    return %arg0, %c0_i32, %c0_i32_0 : i32, i32, i32
  }
  func.func @transform_1(%arg0: i32) -> (i32, i32, i32) {
    %c0_i32 = arith.constant 0 : i32
    %c0_i32_0 = arith.constant 0 : i32
    %c0_i32_1 = arith.constant 0 : i32
    %c0_i32_2 = arith.constant 0 : i32
    return %c0_i32, %c0_i32_0, %c0_i32_1 : i32, i32, i32
  }
  func.func @transform_2(%arg0: i32) -> (i32, i32) {
    %c0_i32 = arith.constant 0 : i32
    %c0_i32_0 = arith.constant 0 : i32
    %c0_i32_1 = arith.constant 0 : i32
    return %c0_i32, %c0_i32_0 : i32, i32
  }
  func.func @transform_3(%arg0: i32) -> (i32, i32) {
    %c0_i32 = arith.constant 0 : i32
    %c0_i32_0 = arith.constant 0 : i32
    %c0_i32_1 = arith.constant 0 : i32
    return %c0_i32, %c0_i32_0 : i32, i32
  }
  func.func @transform_4(%arg0: i32) -> (i32, i32, i32) {
    %c0_i32 = arith.constant 0 : i32
    %c0_i32_0 = arith.constant 0 : i32
    %c0_i32_1 = arith.constant 0 : i32
    %c0_i32_2 = arith.constant 0 : i32
    return %c0_i32, %c0_i32_0, %c0_i32_1 : i32, i32, i32
  }
  func.func @transform_5(%arg0: i32) -> (i32, i32) {
    %c0_i32 = arith.constant 0 : i32
    %c0_i32_0 = arith.constant 0 : i32
    %c0_i32_1 = arith.constant 0 : i32
    return %c0_i32, %c0_i32_0 : i32, i32
  }
  func.func @transform_6(%arg0: i32) -> (i32, i32) {
    %c0_i32 = arith.constant 0 : i32
    %c0_i32_0 = arith.constant 0 : i32
    %c0_i32_1 = arith.constant 0 : i32
    return %c0_i32, %c0_i32_0 : i32, i32
  }
  func.func @transform_7(%arg0: i32) -> (i32, i32, i32) {
    %c0_i32 = arith.constant 0 : i32
    %c0_i32_0 = arith.constant 0 : i32
    %c0_i32_1 = arith.constant 0 : i32
    %c0_i32_2 = arith.constant 0 : i32
    return %c0_i32, %c0_i32_0, %c0_i32_1 : i32, i32, i32
  }
  func.func @transform_8(%arg0: i32) -> (i32, i32, i32) {
    %c0_i32 = arith.constant 0 : i32
    %c0_i32_0 = arith.constant 0 : i32
    %c0_i32_1 = arith.constant 0 : i32
    return %arg0, %c0_i32, %c0_i32_0 : i32, i32, i32
  }
}

</mosaic_0001>

<llo_original>
// kernel: tpu_custom_call.1
$region0: #{tpu_custom_call.1}
  #allocation0 [shape = 'u32[]', space=smem, size = 0x4, offset = 0x4, fixed_abs, tag = 'smem constant byte address 0x4 - core index']
  #allocation1 [shape = 'u32[72,128]{1,0:T(1,128)}', space=vmem, size = 0x9000, scoped, tag = 'internal scratch']
  %s0 = inlined_call_operand.vmem [shape: f32[1,8,256], index: 0, kind: input, shape index: {}]
  %s1 = inlined_call_operand.vmem [shape: f32[9,8,8], index: 1, kind: input, shape index: {}]
  %s2 = inlined_call_operand.vmem [shape: f32[8,1], index: 2, kind: input, shape index: {}]
  %s3 = inlined_call_operand.vmem [shape: f32[8,1], index: 3, kind: input, shape index: {}]
  %s4 = inlined_call_operand.vmem [shape: f32[9,8,8], index: 4, kind: input, shape index: {}]
  %s5 = inlined_call_operand.vmem [shape: f32[8,1], index: 5, kind: input, shape index: {}]
  %s6 = inlined_call_operand.vmem [shape: f32[8,1], index: 6, kind: input, shape index: {}]
  %s7 = inlined_call_operand.vmem [shape: f32[9,1,256], index: 7, kind: input, shape index: {}]
  %s8 = inlined_call_operand.hbm [shape: f32[1,8,256], index: 8, kind: output, shape index: {}]
  %s9 = sld [smem:[#allocation0]]
  $region42: #{tpu_custom_call.1} parent=0
    _
  %s11 = ssub.s32 1, %s9
  %s12 = scalar_select 0, %s11, %s9
  $region1: #{tpu_custom_call.1} parent=0
    #allocation2 [shape = 'u8[8192]{0}', space=vmem, size = 0x2000, scoped, tag = 'output window, operand 0, single buffered']
    #allocation3 [shape = 's32[1]{0}', space=sflag, size = 0x4, scoped, tag = 'scoped memory for tpu_custom_call.1']
    %13 = vsyncpa [#allocation3], 0
    // Predicated region
    $region2: #{tpu_custom_call.1} parent=1 // pred_check
      _
    $region3: #{tpu_custom_call.1} parent=1 // pred_check_branch
      %15 = sbr.rel (0) target = $region5
    $region4: #{tpu_custom_call.1} parent=1 // pred_region
      _
    $region5: #{tpu_custom_call.1} parent=1 // pred_fallthru
      _
    // Predicated region
    $region6: #{tpu_custom_call.1} parent=1 // pred_check
      _
    $region7: #{tpu_custom_call.1} parent=1 // pred_check_branch
      %17 = sbr.rel (0) target = $region9
    $region8: #{tpu_custom_call.1} parent=1 // pred_region
      _
    $region9: #{tpu_custom_call.1} parent=1 // pred_fallthru
      _
    // Predicated region
    $region10: #{tpu_custom_call.1} parent=1 // pred_check
      _
    $region11: #{tpu_custom_call.1} parent=1 // pred_check_branch
      %19 = sbr.rel (0) target = $region13
    $region12: #{tpu_custom_call.1} parent=1 // pred_region
      _
    $region13: #{tpu_custom_call.1} parent=1 // pred_fallthru
      _
    // Predicated region
    $region14: #{tpu_custom_call.1} parent=1 // pred_check
      _
    $region15: #{tpu_custom_call.1} parent=1 // pred_check_branch
      %21 = sbr.rel (0) target = $region17
    $region16: #{tpu_custom_call.1} parent=1 // pred_region
      _
    $region17: #{tpu_custom_call.1} parent=1 // pred_fallthru
      _
    // Predicated region
    $region18: #{tpu_custom_call.1} parent=1 // pred_check
      _
    $region19: #{tpu_custom_call.1} parent=1 // pred_check_branch
      %23 = sbr.rel (0) target = $region21
    $region20: #{tpu_custom_call.1} parent=1 // pred_region
      _
    $region21: #{tpu_custom_call.1} parent=1 // pred_fallthru
      _
    // Predicated region
    $region22: #{tpu_custom_call.1} parent=1 // pred_check
      _
    $region23: #{tpu_custom_call.1} parent=1 // pred_check_branch
      %25 = sbr.rel (0) target = $region25
    $region24: #{tpu_custom_call.1} parent=1 // pred_region
      _
    $region25: #{tpu_custom_call.1} parent=1 // pred_fallthru
      _
    // Predicated region
    $region26: #{tpu_custom_call.1} parent=1 // pred_check
      _
    $region27: #{tpu_custom_call.1} parent=1 // pred_check_branch
      %27 = sbr.rel (0) target = $region29
    $region28: #{tpu_custom_call.1} parent=1 // pred_region
      _
    $region29: #{tpu_custom_call.1} parent=1 // pred_fallthru
      _
    // Predicated region
    $region30: #{tpu_custom_call.1} parent=1 // pred_check
      _
    $region31: #{tpu_custom_call.1} parent=1 // pred_check_branch
      %29 = sbr.rel (0) target = $region33
    $region32: #{tpu_custom_call.1} parent=1 // pred_region
      _
    $region33: #{tpu_custom_call.1} parent=1 // pred_fallthru
      _
    %v30 = vld [vmem:[%s0] sm:$0xff]
    %v31 = vld [vmem:[%s0 + $0x8] sm:$0xff]
    %v32 = vld [vmem:[%s2] sm:$0xff]
    %v33 = vld [vmem:[%s3] sm:$0xff]
    %v34 = vld [vmem:[%s5] sm:$0xff]
    %v35 = vld [vmem:[%s6] sm:$0xff]
    %v36 = vld [vmem:[%s7] sm:$0x3]
    %s37 = scalar_lea.vmem %s7, 2
    %v38 = vld [vmem:[%s37] sm:$0x3]
    %s39 = scalar_lea.vmem %s7, 4
    %v40 = vld [vmem:[%s39] sm:$0x3]
    %s41 = scalar_lea.vmem %s7, 6
    %v42 = vld [vmem:[%s41] sm:$0x3]
    %s43 = scalar_lea.vmem %s7, 10
    %v44 = vld [vmem:[%s43] sm:$0x3]
    %s45 = scalar_lea.vmem %s7, 12
    %v46 = vld [vmem:[%s45] sm:$0x3]
    %s47 = scalar_lea.vmem %s7, 14
    %v48 = vld [vmem:[%s47] sm:$0x3]
    %s49 = scalar_lea.vmem %s7, 16
    %v50 = vld [vmem:[%s49] sm:$0x3]
    %51 = vrot.lane.b32.xlu0 %v30, 17
    %v52 = vpop.permute.xlu0 %51
    %53 = vrot.lane.b32.xlu0 %v31, 17
    %v54 = vpop.permute.xlu0 %53
    %v55 = vlaneseq
    %v56 = vand.u32 %v55, 127
    %vm57 = vcmp.lt.s32.totalorder %v56, 17
    %v58 = vsel %vm57, %v52, %v54
    %v59 = vsel %vm57, %v54, %v52
    %v61 = vperm.slane %v36, 0
    %v62 = vperm.slane %v36, 1
    %v65 = vmul.f32 %v59, %v61
    %v66 = vmul.f32 %v58, %v62
    %v67 = vld [vmem:[%s1] sm:$0xff]
    %68 = vrot.lane.b32.xlu0 %v30, 16
    %v69 = vpop.permute.xlu0 %68
    %70 = vrot.lane.b32.xlu0 %v31, 16
    %v71 = vpop.permute.xlu0 %70
    %vm72 = vcmp.lt.s32.totalorder %v56, 16
    %v73 = vsel %vm72, %v69, %v71
    %v74 = vsel %vm72, %v71, %v69
    %v76 = vperm.slane %v38, 0
    %v77 = vperm.slane %v38, 1
    %v80 = vmul.f32 %v74, %v76
    %v81 = vmul.f32 %v73, %v77
    %s82 = scalar_lea.vmem %s1, 8
    %v83 = vld [vmem:[%s82] sm:$0xff]
    %vm84 = vcmask 64512
    %v86 = vsel %vm84, %v83, 0
    %88 = vmatpush.msra.mxu0 0.0
    %89 = vmatpush.msra.mxu0 0.0
    %90 = vmatpush.msra.mxu0 0.0
    %91 = vmatpush.msra.mxu0 0.0
    %92 = vmatpush.msra.mxu0 0.0
    %93 = vmatpush.msra.mxu0 0.0
    %94 = vmatpush.msra.mxu0 0.0
    %95 = vmatpush.msra.mxu0 0.0
    %96 = vmatpush.msra.mxu0 0.0
    %97 = vmatpush.msra.mxu0 0.0
    %98 = vmatpush.msra.mxu0 0.0
    %99 = vmatpush.msra.mxu0 0.0
    %100 = vmatpush.msra.mxu0 0.0
    %101 = vmatpush.msra.mxu0 0.0
    %102 = vmatpush.msra.mxu0 0.0
    %103 = vmatpush.msra.mxu0 %v80
    %104 = vmatmul.f32.gmra.mxu0 %v86
    %v105 = vpop.f32.mrf.mxu0
    %v106 = vadd.f32 0.0, %v105
    %107 = vdwg.mxu0
    %108 = vmatpush.msra.mxu0 0.0
    %109 = vmatpush.msra.mxu0 0.0
    %110 = vmatpush.msra.mxu0 0.0
    %111 = vmatpush.msra.mxu0 0.0
    %112 = vmatpush.msra.mxu0 0.0
    %113 = vmatpush.msra.mxu0 0.0
    %114 = vmatpush.msra.mxu0 0.0
    %115 = vmatpush.msra.mxu0 0.0
    %116 = vmatpush.msra.mxu0 0.0
    %117 = vmatpush.msra.mxu0 0.0
    %118 = vmatpush.msra.mxu0 0.0
    %119 = vmatpush.msra.mxu0 0.0
    %120 = vmatpush.msra.mxu0 0.0
    %121 = vmatpush.msra.mxu0 0.0
    %122 = vmatpush.msra.mxu0 0.0
    %123 = vmatpush.msra.mxu0 %v81
    %124 = vmatmul.f32.gmra.mxu0 %v86
    %v125 = vpop.f32.mrf.mxu0
    %v126 = vadd.f32 0.0, %v125
    %127 = vdwg.mxu0
    %v129 = vsel %vm84, %v67, 0
    %131 = vmatpush.msra.mxu0 0.0
    %132 = vmatpush.msra.mxu0 0.0
    %133 = vmatpush.msra.mxu0 0.0
    %134 = vmatpush.msra.mxu0 0.0
    %135 = vmatpush.msra.mxu0 0.0
    %136 = vmatpush.msra.mxu0 0.0
    %137 = vmatpush.msra.mxu0 0.0
    %138 = vmatpush.msra.mxu0 0.0
    %139 = vmatpush.msra.mxu0 0.0
    %140 = vmatpush.msra.mxu0 0.0
    %141 = vmatpush.msra.mxu0 0.0
    %142 = vmatpush.msra.mxu0 0.0
    %143 = vmatpush.msra.mxu0 0.0
    %144 = vmatpush.msra.mxu0 0.0
    %145 = vmatpush.msra.mxu0 0.0
    %146 = vmatpush.msra.mxu0 %v65
    %147 = vmatmul.f32.gmra.mxu0 %v129
    %v148 = vpop.f32.mrf.mxu0
    %v149 = vadd.f32 %v106, %v148
    %150 = vdwg.mxu0
    %151 = vmatpush.msra.mxu0 0.0
    %152 = vmatpush.msra.mxu0 0.0
    %153 = vmatpush.msra.mxu0 0.0
    %154 = vmatpush.msra.mxu0 0.0
    %155 = vmatpush.msra.mxu0 0.0
    %156 = vmatpush.msra.mxu0 0.0
    %157 = vmatpush.msra.mxu0 0.0
    %158 = vmatpush.msra.mxu0 0.0
    %159 = vmatpush.msra.mxu0 0.0
    %160 = vmatpush.msra.mxu0 0.0
    %161 = vmatpush.msra.mxu0 0.0
    %162 = vmatpush.msra.mxu0 0.0
    %163 = vmatpush.msra.mxu0 0.0
    %164 = vmatpush.msra.mxu0 0.0
    %165 = vmatpush.msra.mxu0 0.0
    %166 = vmatpush.msra.mxu0 %v66
    %167 = vmatmul.f32.gmra.mxu0 %v129
    %v168 = vpop.f32.mrf.mxu0
    %v169 = vadd.f32 %v126, %v168
    %170 = vdwg.mxu0
    %171 = vrot.lane.b32.xlu0 %v30, 15
    %v172 = vpop.permute.xlu0 %171
    %173 = vrot.lane.b32.xlu0 %v31, 15
    %v174 = vpop.permute.xlu0 %173
    %vm175 = vcmp.lt.s32.totalorder %v56, 15
    %v176 = vsel %vm175, %v172, %v174
    %v177 = vsel %vm175, %v174, %v172
    %v179 = vperm.slane %v40, 0
    %v180 = vperm.slane %v40, 1
    %v183 = vmul.f32 %v177, %v179
    %v184 = vmul.f32 %v176, %v180
    %s185 = scalar_lea.vmem %s1, 16
    %v186 = vld [vmem:[%s185] sm:$0xff]
    %v188 = vsel %vm84, %v186, 0
    %190 = vmatpush.msra.mxu0 0.0
    %191 = vmatpush.msra.mxu0 0.0
    %192 = vmatpush.msra.mxu0 0.0
    %193 = vmatpush.msra.mxu0 0.0
    %194 = vmatpush.msra.mxu0 0.0
    %195 = vmatpush.msra.mxu0 0.0
    %196 = vmatpush.msra.mxu0 0.0
    %197 = vmatpush.msra.mxu0 0.0
    %198 = vmatpush.msra.mxu0 0.0
    %199 = vmatpush.msra.mxu0 0.0
    %200 = vmatpush.msra.mxu0 0.0
    %201 = vmatpush.msra.mxu0 0.0
    %202 = vmatpush.msra.mxu0 0.0
    %203 = vmatpush.msra.mxu0 0.0
    %204 = vmatpush.msra.mxu0 0.0
    %205 = vmatpush.msra.mxu0 %v183
    %206 = vmatmul.f32.gmra.mxu0 %v188
    %v207 = vpop.f32.mrf.mxu0
    %v208 = vadd.f32 0.0, %v207
    %209 = vdwg.mxu0
    %210 = vmatpush.msra.mxu0 0.0
    %211 = vmatpush.msra.mxu0 0.0
    %212 = vmatpush.msra.mxu0 0.0
    %213 = vmatpush.msra.mxu0 0.0
    %214 = vmatpush.msra.mxu0 0.0
    %215 = vmatpush.msra.mxu0 0.0
    %216 = vmatpush.msra.mxu0 0.0
    %217 = vmatpush.msra.mxu0 0.0
    %218 = vmatpush.msra.mxu0 0.0
    %219 = vmatpush.msra.mxu0 0.0
    %220 = vmatpush.msra.mxu0 0.0
    %221 = vmatpush.msra.mxu0 0.0
    %222 = vmatpush.msra.mxu0 0.0
    %223 = vmatpush.msra.mxu0 0.0
    %224 = vmatpush.msra.mxu0 0.0
    %225 = vmatpush.msra.mxu0 %v184
    %226 = vmatmul.f32.gmra.mxu0 %v188
    %v227 = vpop.f32.mrf.mxu0
    %v228 = vadd.f32 0.0, %v227
    %229 = vdwg.mxu0
    %v230 = vadd.f32 %v149, %v208
    %v231 = vadd.f32 %v169, %v228
    %232 = vrot.lane.b32.xlu0 %v30, 1
    %v233 = vpop.permute.xlu0 %232
    %234 = vrot.lane.b32.xlu0 %v31, 1
    %v235 = vpop.permute.xlu0 %234
    %vm236 = vcmp.lt.s32.totalorder %v56, 1
    %v237 = vsel %vm236, %v233, %v235
    %v238 = vsel %vm236, %v235, %v233
    %v240 = vperm.slane %v42, 0
    %v241 = vperm.slane %v42, 1
    %v244 = vmul.f32 %v238, %v240
    %v245 = vmul.f32 %v237, %v241
    %s246 = scalar_lea.vmem %s1, 24
    %v247 = vld [vmem:[%s246] sm:$0xff]
    %v249 = vsel %vm84, %v247, 0
    %251 = vmatpush.msra.mxu0 0.0
    %252 = vmatpush.msra.mxu0 0.0
    %253 = vmatpush.msra.mxu0 0.0
    %254 = vmatpush.msra.mxu0 0.0
    %255 = vmatpush.msra.mxu0 0.0
    %256 = vmatpush.msra.mxu0 0.0
    %257 = vmatpush.msra.mxu0 0.0
    %258 = vmatpush.msra.mxu0 0.0
    %259 = vmatpush.msra.mxu0 0.0
    %260 = vmatpush.msra.mxu0 0.0
    %261 = vmatpush.msra.mxu0 0.0
    %262 = vmatpush.msra.mxu0 0.0
    %263 = vmatpush.msra.mxu0 0.0
    %264 = vmatpush.msra.mxu0 0.0
    %265 = vmatpush.msra.mxu0 0.0
    %266 = vmatpush.msra.mxu0 %v244
    %267 = vmatmul.f32.gmra.mxu0 %v249
    %v268 = vpop.f32.mrf.mxu0
    %v269 = vadd.f32 0.0, %v268
    %270 = vdwg.mxu0
    %271 = vmatpush.msra.mxu0 0.0
    %272 = vmatpush.msra.mxu0 0.0
    %273 = vmatpush.msra.mxu0 0.0
    %274 = vmatpush.msra.mxu0 0.0
    %275 = vmatpush.msra.mxu0 0.0
    %276 = vmatpush.msra.mxu0 0.0
    %277 = vmatpush.msra.mxu0 0.0
    %278 = vmatpush.msra.mxu0 0.0
    %279 = vmatpush.msra.mxu0 0.0
    %280 = vmatpush.msra.mxu0 0.0
    %281 = vmatpush.msra.mxu0 0.0
    %282 = vmatpush.msra.mxu0 0.0
    %283 = vmatpush.msra.mxu0 0.0
    %284 = vmatpush.msra.mxu0 0.0
    %285 = vmatpush.msra.mxu0 0.0
    %286 = vmatpush.msra.mxu0 %v245
    %287 = vmatmul.f32.gmra.mxu0 %v249
    %v288 = vpop.f32.mrf.mxu0
    %v289 = vadd.f32 0.0, %v288
    %290 = vdwg.mxu0
    %v291 = vadd.f32 %v230, %v269
    %v292 = vadd.f32 %v231, %v289
    %s293 = scalar_lea.vmem %s1, 32
    %v294 = vld [vmem:[%s293] sm:$0xff]
    %v296 = vsel %vm84, %v294, 0
    %298 = vmatpush.msra.mxu0 0.0
    %299 = vmatpush.msra.mxu0 0.0
    %300 = vmatpush.msra.mxu0 0.0
    %301 = vmatpush.msra.mxu0 0.0
    %302 = vmatpush.msra.mxu0 0.0
    %303 = vmatpush.msra.mxu0 0.0
    %304 = vmatpush.msra.mxu0 0.0
    %305 = vmatpush.msra.mxu0 0.0
    %306 = vmatpush.msra.mxu0 0.0
    %307 = vmatpush.msra.mxu0 0.0
    %308 = vmatpush.msra.mxu0 0.0
    %309 = vmatpush.msra.mxu0 0.0
    %310 = vmatpush.msra.mxu0 0.0
    %311 = vmatpush.msra.mxu0 0.0
    %312 = vmatpush.msra.mxu0 0.0
    %313 = vmatpush.msra.mxu0 %v30
    %314 = vmatmul.f32.gmra.mxu0 %v296
    %v315 = vpop.f32.mrf.mxu0
    %v316 = vadd.f32 0.0, %v315
    %317 = vdwg.mxu0
    %318 = vmatpush.msra.mxu0 0.0
    %319 = vmatpush.msra.mxu0 0.0
    %320 = vmatpush.msra.mxu0 0.0
    %321 = vmatpush.msra.mxu0 0.0
    %322 = vmatpush.msra.mxu0 0.0
    %323 = vmatpush.msra.mxu0 0.0
    %324 = vmatpush.msra.mxu0 0.0
    %325 = vmatpush.msra.mxu0 0.0
    %326 = vmatpush.msra.mxu0 0.0
    %327 = vmatpush.msra.mxu0 0.0
    %328 = vmatpush.msra.mxu0 0.0
    %329 = vmatpush.msra.mxu0 0.0
    %330 = vmatpush.msra.mxu0 0.0
    %331 = vmatpush.msra.mxu0 0.0
    %332 = vmatpush.msra.mxu0 0.0
    %333 = vmatpush.msra.mxu0 %v31
    %334 = vmatmul.f32.gmra.mxu0 %v296
    %v335 = vpop.f32.mrf.mxu0
    %v336 = vadd.f32 0.0, %v335
    %337 = vdwg.mxu0
    %v338 = vadd.f32 %v291, %v316
    %v339 = vadd.f32 %v292, %v336
    %340 = vrot.lane.b32.xlu0 %v30, 127
    %v341 = vpop.permute.xlu0 %340
    %342 = vrot.lane.b32.xlu0 %v31, 127
    %v343 = vpop.permute.xlu0 %342
    %vm344 = vcmp.lt.s32.totalorder %v56, 127
    %v345 = vsel %vm344, %v341, %v343
    %v346 = vsel %vm344, %v343, %v341
    %v348 = vperm.slane %v44, 0
    %v349 = vperm.slane %v44, 1
    %v352 = vmul.f32 %v345, %v348
    %v353 = vmul.f32 %v346, %v349
    %s354 = scalar_lea.vmem %s1, 40
    %v355 = vld [vmem:[%s354] sm:$0xff]
    %v357 = vsel %vm84, %v355, 0
    %359 = vmatpush.msra.mxu0 0.0
    %360 = vmatpush.msra.mxu0 0.0
    %361 = vmatpush.msra.mxu0 0.0
    %362 = vmatpush.msra.mxu0 0.0
    %363 = vmatpush.msra.mxu0 0.0
    %364 = vmatpush.msra.mxu0 0.0
    %365 = vmatpush.msra.mxu0 0.0
    %366 = vmatpush.msra.mxu0 0.0
    %367 = vmatpush.msra.mxu0 0.0
    %368 = vmatpush.msra.mxu0 0.0
    %369 = vmatpush.msra.mxu0 0.0
    %370 = vmatpush.msra.mxu0 0.0
    %371 = vmatpush.msra.mxu0 0.0
    %372 = vmatpush.msra.mxu0 0.0
    %373 = vmatpush.msra.mxu0 0.0
    %374 = vmatpush.msra.mxu0 %v352
    %375 = vmatmul.f32.gmra.mxu0 %v357
    %v376 = vpop.f32.mrf.mxu0
    %v377 = vadd.f32 0.0, %v376
    %378 = vdwg.mxu0
    %379 = vmatpush.msra.mxu0 0.0
    %380 = vmatpush.msra.mxu0 0.0
    %381 = vmatpush.msra.mxu0 0.0
    %382 = vmatpush.msra.mxu0 0.0
    %383 = vmatpush.msra.mxu0 0.0
    %384 = vmatpush.msra.mxu0 0.0
    %385 = vmatpush.msra.mxu0 0.0
    %386 = vmatpush.msra.mxu0 0.0
    %387 = vmatpush.msra.mxu0 0.0
    %388 = vmatpush.msra.mxu0 0.0
    %389 = vmatpush.msra.mxu0 0.0
    %390 = vmatpush.msra.mxu0 0.0
    %391 = vmatpush.msra.mxu0 0.0
    %392 = vmatpush.msra.mxu0 0.0
    %393 = vmatpush.msra.mxu0 0.0
    %394 = vmatpush.msra.mxu0 %v353
    %395 = vmatmul.f32.gmra.mxu0 %v357
    %v396 = vpop.f32.mrf.mxu0
    %v397 = vadd.f32 0.0, %v396
    %398 = vdwg.mxu0
    %v399 = vadd.f32 %v338, %v377
    %v400 = vadd.f32 %v339, %v397
    %401 = vrot.lane.b32.xlu0 %v30, 113
    %v402 = vpop.permute.xlu0 %401
    %403 = vrot.lane.b32.xlu0 %v31, 113
    %v404 = vpop.permute.xlu0 %403
    %vm405 = vcmp.lt.s32.totalorder %v56, 113
    %v406 = vsel %vm405, %v402, %v404
    %v407 = vsel %vm405, %v404, %v402
    %v409 = vperm.slane %v46, 0
    %v410 = vperm.slane %v46, 1
    %v413 = vmul.f32 %v406, %v409
    %v414 = vmul.f32 %v407, %v410
    %s415 = scalar_lea.vmem %s1, 48
    %v416 = vld [vmem:[%s415] sm:$0xff]
    %v418 = vsel %vm84, %v416, 0
    %420 = vmatpush.msra.mxu0 0.0
    %421 = vmatpush.msra.mxu0 0.0
    %422 = vmatpush.msra.mxu0 0.0
    %423 = vmatpush.msra.mxu0 0.0
    %424 = vmatpush.msra.mxu0 0.0
    %425 = vmatpush.msra.mxu0 0.0
    %426 = vmatpush.msra.mxu0 0.0
    %427 = vmatpush.msra.mxu0 0.0
    %428 = vmatpush.msra.mxu0 0.0
    %429 = vmatpush.msra.mxu0 0.0
    %430 = vmatpush.msra.mxu0 0.0
    %431 = vmatpush.msra.mxu0 0.0
    %432 = vmatpush.msra.mxu0 0.0
    %433 = vmatpush.msra.mxu0 0.0
    %434 = vmatpush.msra.mxu0 0.0
    %435 = vmatpush.msra.mxu0 %v413
    %436 = vmatmul.f32.gmra.mxu0 %v418
    %v437 = vpop.f32.mrf.mxu0
    %v438 = vadd.f32 0.0, %v437
    %439 = vdwg.mxu0
    %440 = vmatpush.msra.mxu0 0.0
    %441 = vmatpush.msra.mxu0 0.0
    %442 = vmatpush.msra.mxu0 0.0
    %443 = vmatpush.msra.mxu0 0.0
    %444 = vmatpush.msra.mxu0 0.0
    %445 = vmatpush.msra.mxu0 0.0
    %446 = vmatpush.msra.mxu0 0.0
    %447 = vmatpush.msra.mxu0 0.0
    %448 = vmatpush.msra.mxu0 0.0
    %449 = vmatpush.msra.mxu0 0.0
    %450 = vmatpush.msra.mxu0 0.0
    %451 = vmatpush.msra.mxu0 0.0
    %452 = vmatpush.msra.mxu0 0.0
    %453 = vmatpush.msra.mxu0 0.0
    %454 = vmatpush.msra.mxu0 0.0
    %455 = vmatpush.msra.mxu0 %v414
    %456 = vmatmul.f32.gmra.mxu0 %v418
    %v457 = vpop.f32.mrf.mxu0
    %v458 = vadd.f32 0.0, %v457
    %459 = vdwg.mxu0
    %v460 = vadd.f32 %v399, %v438
    %v461 = vadd.f32 %v400, %v458
    %462 = vrot.lane.b32.xlu0 %v30, 112
    %v463 = vpop.permute.xlu0 %462
    %464 = vrot.lane.b32.xlu0 %v31, 112
    %v465 = vpop.permute.xlu0 %464
    %vm466 = vcmp.lt.s32.totalorder %v56, 112
    %v467 = vsel %vm466, %v463, %v465
    %v468 = vsel %vm466, %v465, %v463
    %v470 = vperm.slane %v48, 0
    %v471 = vperm.slane %v48, 1
    %v474 = vmul.f32 %v467, %v470
    %v475 = vmul.f32 %v468, %v471
    %s476 = scalar_lea.vmem %s1, 56
    %v477 = vld [vmem:[%s476] sm:$0xff]
    %v479 = vsel %vm84, %v477, 0
    %481 = vmatpush.msra.mxu0 0.0
    %482 = vmatpush.msra.mxu0 0.0
    %483 = vmatpush.msra.mxu0 0.0
    %484 = vmatpush.msra.mxu0 0.0
    %485 = vmatpush.msra.mxu0 0.0
    %486 = vmatpush.msra.mxu0 0.0
    %487 = vmatpush.msra.mxu0 0.0
    %488 = vmatpush.msra.mxu0 0.0
    %489 = vmatpush.msra.mxu0 0.0
    %490 = vmatpush.msra.mxu0 0.0
    %491 = vmatpush.msra.mxu0 0.0
    %492 = vmatpush.msra.mxu0 0.0
    %493 = vmatpush.msra.mxu0 0.0
    %494 = vmatpush.msra.mxu0 0.0
    %495 = vmatpush.msra.mxu0 0.0
    %496 = vmatpush.msra.mxu0 %v474
    %497 = vmatmul.f32.gmra.mxu0 %v479
    %v498 = vpop.f32.mrf.mxu0
    %v499 = vadd.f32 0.0, %v498
    %500 = vdwg.mxu0
    %501 = vmatpush.msra.mxu0 0.0
    %502 = vmatpush.msra.mxu0 0.0
    %503 = vmatpush.msra.mxu0 0.0
    %504 = vmatpush.msra.mxu0 0.0
    %505 = vmatpush.msra.mxu0 0.0
    %506 = vmatpush.msra.mxu0 0.0
    %507 = vmatpush.msra.mxu0 0.0
    %508 = vmatpush.msra.mxu0 0.0
    %509 = vmatpush.msra.mxu0 0.0
    %510 = vmatpush.msra.mxu0 0.0
    %511 = vmatpush.msra.mxu0 0.0
    %512 = vmatpush.msra.mxu0 0.0
    %513 = vmatpush.msra.mxu0 0.0
    %514 = vmatpush.msra.mxu0 0.0
    %515 = vmatpush.msra.mxu0 0.0
    %516 = vmatpush.msra.mxu0 %v475
    %517 = vmatmul.f32.gmra.mxu0 %v479
    %v518 = vpop.f32.mrf.mxu0
    %v519 = vadd.f32 0.0, %v518
    %520 = vdwg.mxu0
    %v521 = vadd.f32 %v460, %v499
    %v522 = vadd.f32 %v461, %v519
    %523 = vrot.lane.b32.xlu0 %v30, 111
    %v524 = vpop.permute.xlu0 %523
    %525 = vrot.lane.b32.xlu0 %v31, 111
    %v526 = vpop.permute.xlu0 %525
    %vm527 = vcmp.lt.s32.totalorder %v56, 111
    %v528 = vsel %vm527, %v524, %v526
    %v529 = vsel %vm527, %v526, %v524
    %v531 = vperm.slane %v50, 0
    %v532 = vperm.slane %v50, 1
    %v535 = vmul.f32 %v528, %v531
    %v536 = vmul.f32 %v529, %v532
    %s537 = scalar_lea.vmem %s1, 64
    %v538 = vld [vmem:[%s537] sm:$0xff]
    %v540 = vsel %vm84, %v538, 0
    %542 = vmatpush.msra.mxu0 0.0
    %543 = vmatpush.msra.mxu0 0.0
    %544 = vmatpush.msra.mxu0 0.0
    %545 = vmatpush.msra.mxu0 0.0
    %546 = vmatpush.msra.mxu0 0.0
    %547 = vmatpush.msra.mxu0 0.0
    %548 = vmatpush.msra.mxu0 0.0
    %549 = vmatpush.msra.mxu0 0.0
    %550 = vmatpush.msra.mxu0 0.0
    %551 = vmatpush.msra.mxu0 0.0
    %552 = vmatpush.msra.mxu0 0.0
    %553 = vmatpush.msra.mxu0 0.0
    %554 = vmatpush.msra.mxu0 0.0
    %555 = vmatpush.msra.mxu0 0.0
    %556 = vmatpush.msra.mxu0 0.0
    %557 = vmatpush.msra.mxu0 %v535
    %558 = vmatmul.f32.gmra.mxu0 %v540
    %v559 = vpop.f32.mrf.mxu0
    %v560 = vadd.f32 0.0, %v559
    %561 = vdwg.mxu0
    %562 = vmatpush.msra.mxu0 0.0
    %563 = vmatpush.msra.mxu0 0.0
    %564 = vmatpush.msra.mxu0 0.0
    %565 = vmatpush.msra.mxu0 0.0
    %566 = vmatpush.msra.mxu0 0.0
    %567 = vmatpush.msra.mxu0 0.0
    %568 = vmatpush.msra.mxu0 0.0
    %569 = vmatpush.msra.mxu0 0.0
    %570 = vmatpush.msra.mxu0 0.0
    %571 = vmatpush.msra.mxu0 0.0
    %572 = vmatpush.msra.mxu0 0.0
    %573 = vmatpush.msra.mxu0 0.0
    %574 = vmatpush.msra.mxu0 0.0
    %575 = vmatpush.msra.mxu0 0.0
    %576 = vmatpush.msra.mxu0 0.0
    %577 = vmatpush.msra.mxu0 %v536
    %578 = vmatmul.f32.gmra.mxu0 %v540
    %v579 = vpop.f32.mrf.mxu0
    %v580 = vadd.f32 0.0, %v579
    %581 = vdwg.mxu0
    %v582 = vadd.f32 %v521, %v560
    %v583 = vadd.f32 %v522, %v580
    %v584 = vadd.f32 %v582, %v583
    %585 = vadd.xlane.f32.xlu0 %v584
    %v586 = vpop.xlane.xlu0 %585
    %v587 = vmul.f32 %v586, 0.00390625
    %v588 = vsub.f32 %v582, %v587
    %v589 = vsub.f32 %v583, %v587
    %v590 = vmul.f32 %v588, %v588
    %v591 = vmul.f32 %v589, %v589
    %v592 = vadd.f32 %v590, %v591
    %593 = vadd.xlane.f32.xlu0 %v592
    %v594 = vpop.xlane.xlu0 %593
    %v595 = vmul.f32 %v594, 0.00390625
    %v596 = vadd.f32 %v595, 1e-05
    %v597 = vrsqrt.pop %v596
    %v598 = vmul.f32 %v597, %v596
    %v599 = vmul.f32 %v598, %v597
    %v600 = vmul.f32 0.5, %v599
    %v601 = vsub.f32 1.5, %v600
    %v602 = vmul.f32 %v597, %v601
    %vm603 = vweird.f32 %v596
    %vm604 = vweird.f32 %v597
    %vm605 = vmor %vm603, %vm604
    %v606 = vsel %vm605, %v597, %v602
    %v607 = vmul.f32 %v588, %v606
    %v608 = vmul.f32 %v589, %v606
    %610 = vset.pattern.permute.xlu0 0
    %611 = vperm.xlu0 %610, %v32
    %v612 = vpop.permute.xlu0 %611
    %v614 = vmul.f32 %v607, %v612
    %v615 = vmul.f32 %v608, %v612
    %617 = vset.pattern.permute.xlu0 0
    %618 = vperm.xlu0 %617, %v33
    %v619 = vpop.permute.xlu0 %618
    %v621 = vadd.f32 %v614, %v619
    %v622 = vadd.f32 %v615, %v619
    %v623 = vmax.f32 %v621, 0.0
    %v624 = vmax.f32 %v622, 0.0
    %625 = vrot.lane.b32.xlu0 %v623, 17
    %v626 = vpop.permute.xlu0 %625
    %627 = vrot.lane.b32.xlu0 %v624, 17
    %v628 = vpop.permute.xlu0 %627
    %v629 = vsel %vm57, %v626, %v628
    %v630 = vsel %vm57, %v628, %v626
    %v631 = vmul.f32 %v630, %v61
    %v632 = vmul.f32 %v629, %v62
    %v633 = vld [vmem:[%s4] sm:$0xff]
    %634 = vrot.lane.b32.xlu0 %v623, 16
    %v635 = vpop.permute.xlu0 %634
    %636 = vrot.lane.b32.xlu0 %v624, 16
    %v637 = vpop.permute.xlu0 %636
    %v638 = vsel %vm72, %v635, %v637
    %v639 = vsel %vm72, %v637, %v635
    %v640 = vmul.f32 %v639, %v76
    %v641 = vmul.f32 %v638, %v77
    %s642 = scalar_lea.vmem %s4, 8
    %v643 = vld [vmem:[%s642] sm:$0xff]
    %v645 = vsel %vm84, %v643, 0
    %647 = vmatpush.msra.mxu0 0.0
    %648 = vmatpush.msra.mxu0 0.0
    %649 = vmatpush.msra.mxu0 0.0
    %650 = vmatpush.msra.mxu0 0.0
    %651 = vmatpush.msra.mxu0 0.0
    %652 = vmatpush.msra.mxu0 0.0
    %653 = vmatpush.msra.mxu0 0.0
    %654 = vmatpush.msra.mxu0 0.0
    %655 = vmatpush.msra.mxu0 0.0
    %656 = vmatpush.msra.mxu0 0.0
    %657 = vmatpush.msra.mxu0 0.0
    %658 = vmatpush.msra.mxu0 0.0
    %659 = vmatpush.msra.mxu0 0.0
    %660 = vmatpush.msra.mxu0 0.0
    %661 = vmatpush.msra.mxu0 0.0
    %662 = vmatpush.msra.mxu0 %v640
    %663 = vmatmul.f32.gmra.mxu0 %v645
    %v664 = vpop.f32.mrf.mxu0
    %v665 = vadd.f32 0.0, %v664
    %666 = vdwg.mxu0
    %667 = vmatpush.msra.mxu0 0.0
    %668 = vmatpush.msra.mxu0 0.0
    %669 = vmatpush.msra.mxu0 0.0
    %670 = vmatpush.msra.mxu0 0.0
    %671 = vmatpush.msra.mxu0 0.0
    %672 = vmatpush.msra.mxu0 0.0
    %673 = vmatpush.msra.mxu0 0.0
    %674 = vmatpush.msra.mxu0 0.0
    %675 = vmatpush.msra.mxu0 0.0
    %676 = vmatpush.msra.mxu0 0.0
    %677 = vmatpush.msra.mxu0 0.0
    %678 = vmatpush.msra.mxu0 0.0
    %679 = vmatpush.msra.mxu0 0.0
    %680 = vmatpush.msra.mxu0 0.0
    %681 = vmatpush.msra.mxu0 0.0
    %682 = vmatpush.msra.mxu0 %v641
    %683 = vmatmul.f32.gmra.mxu0 %v645
    %v684 = vpop.f32.mrf.mxu0
    %v685 = vadd.f32 0.0, %v684
    %686 = vdwg.mxu0
    %v688 = vsel %vm84, %v633, 0
    %690 = vmatpush.msra.mxu0 0.0
    %691 = vmatpush.msra.mxu0 0.0
    %692 = vmatpush.msra.mxu0 0.0
    %693 = vmatpush.msra.mxu0 0.0
    %694 = vmatpush.msra.mxu0 0.0
    %695 = vmatpush.msra.mxu0 0.0
    %696 = vmatpush.msra.mxu0 0.0
    %697 = vmatpush.msra.mxu0 0.0
    %698 = vmatpush.msra.mxu0 0.0
    %699 = vmatpush.msra.mxu0 0.0
    %700 = vmatpush.msra.mxu0 0.0
    %701 = vmatpush.msra.mxu0 0.0
    %702 = vmatpush.msra.mxu0 0.0
    %703 = vmatpush.msra.mxu0 0.0
    %704 = vmatpush.msra.mxu0 0.0
    %705 = vmatpush.msra.mxu0 %v631
    %706 = vmatmul.f32.gmra.mxu0 %v688
    %v707 = vpop.f32.mrf.mxu0
    %v708 = vadd.f32 %v665, %v707
    %709 = vdwg.mxu0
    %710 = vmatpush.msra.mxu0 0.0
    %711 = vmatpush.msra.mxu0 0.0
    %712 = vmatpush.msra.mxu0 0.0
    %713 = vmatpush.msra.mxu0 0.0
    %714 = vmatpush.msra.mxu0 0.0
    %715 = vmatpush.msra.mxu0 0.0
    %716 = vmatpush.msra.mxu0 0.0
    %717 = vmatpush.msra.mxu0 0.0
    %718 = vmatpush.msra.mxu0 0.0
    %719 = vmatpush.msra.mxu0 0.0
    %720 = vmatpush.msra.mxu0 0.0
    %721 = vmatpush.msra.mxu0 0.0
    %722 = vmatpush.msra.mxu0 0.0
    %723 = vmatpush.msra.mxu0 0.0
    %724 = vmatpush.msra.mxu0 0.0
    %725 = vmatpush.msra.mxu0 %v632
    %726 = vmatmul.f32.gmra.mxu0 %v688
    %v727 = vpop.f32.mrf.mxu0
    %v728 = vadd.f32 %v685, %v727
    %729 = vdwg.mxu0
    %730 = vrot.lane.b32.xlu0 %v623, 15
    %v731 = vpop.permute.xlu0 %730
    %732 = vrot.lane.b32.xlu0 %v624, 15
    %v733 = vpop.permute.xlu0 %732
    %v734 = vsel %vm175, %v731, %v733
    %v735 = vsel %vm175, %v733, %v731
    %v736 = vmul.f32 %v735, %v179
    %v737 = vmul.f32 %v734, %v180
    %s738 = scalar_lea.vmem %s4, 16
    %v739 = vld [vmem:[%s738] sm:$0xff]
    %v741 = vsel %vm84, %v739, 0
    %743 = vmatpush.msra.mxu0 0.0
    %744 = vmatpush.msra.mxu0 0.0
    %745 = vmatpush.msra.mxu0 0.0
    %746 = vmatpush.msra.mxu0 0.0
    %747 = vmatpush.msra.mxu0 0.0
    %748 = vmatpush.msra.mxu0 0.0
    %749 = vmatpush.msra.mxu0 0.0
    %750 = vmatpush.msra.mxu0 0.0
    %751 = vmatpush.msra.mxu0 0.0
    %752 = vmatpush.msra.mxu0 0.0
    %753 = vmatpush.msra.mxu0 0.0
    %754 = vmatpush.msra.mxu0 0.0
    %755 = vmatpush.msra.mxu0 0.0
    %756 = vmatpush.msra.mxu0 0.0
    %757 = vmatpush.msra.mxu0 0.0
    %758 = vmatpush.msra.mxu0 %v736
    %759 = vmatmul.f32.gmra.mxu0 %v741
    %v760 = vpop.f32.mrf.mxu0
    %v761 = vadd.f32 0.0, %v760
    %762 = vdwg.mxu0
    %763 = vmatpush.msra.mxu0 0.0
    %764 = vmatpush.msra.mxu0 0.0
    %765 = vmatpush.msra.mxu0 0.0
    %766 = vmatpush.msra.mxu0 0.0
    %767 = vmatpush.msra.mxu0 0.0
    %768 = vmatpush.msra.mxu0 0.0
    %769 = vmatpush.msra.mxu0 0.0
    %770 = vmatpush.msra.mxu0 0.0
    %771 = vmatpush.msra.mxu0 0.0
    %772 = vmatpush.msra.mxu0 0.0
    %773 = vmatpush.msra.mxu0 0.0
    %774 = vmatpush.msra.mxu0 0.0
    %775 = vmatpush.msra.mxu0 0.0
    %776 = vmatpush.msra.mxu0 0.0
    %777 = vmatpush.msra.mxu0 0.0
    %778 = vmatpush.msra.mxu0 %v737
    %779 = vmatmul.f32.gmra.mxu0 %v741
    %v780 = vpop.f32.mrf.mxu0
    %v781 = vadd.f32 0.0, %v780
    %782 = vdwg.mxu0
    %v783 = vadd.f32 %v708, %v761
    %v784 = vadd.f32 %v728, %v781
    %785 = vrot.lane.b32.xlu0 %v623, 1
    %v786 = vpop.permute.xlu0 %785
    %787 = vrot.lane.b32.xlu0 %v624, 1
    %v788 = vpop.permute.xlu0 %787
    %v789 = vsel %vm236, %v786, %v788
    %v790 = vsel %vm236, %v788, %v786
    %v791 = vmul.f32 %v790, %v240
    %v792 = vmul.f32 %v789, %v241
    %s793 = scalar_lea.vmem %s4, 24
    %v794 = vld [vmem:[%s793] sm:$0xff]
    %v796 = vsel %vm84, %v794, 0
    %798 = vmatpush.msra.mxu0 0.0
    %799 = vmatpush.msra.mxu0 0.0
    %800 = vmatpush.msra.mxu0 0.0
    %801 = vmatpush.msra.mxu0 0.0
    %802 = vmatpush.msra.mxu0 0.0
    %803 = vmatpush.msra.mxu0 0.0
    %804 = vmatpush.msra.mxu0 0.0
    %805 = vmatpush.msra.mxu0 0.0
    %806 = vmatpush.msra.mxu0 0.0
    %807 = vmatpush.msra.mxu0 0.0
    %808 = vmatpush.msra.mxu0 0.0
    %809 = vmatpush.msra.mxu0 0.0
    %810 = vmatpush.msra.mxu0 0.0
    %811 = vmatpush.msra.mxu0 0.0
    %812 = vmatpush.msra.mxu0 0.0
    %813 = vmatpush.msra.mxu0 %v791
    %814 = vmatmul.f32.gmra.mxu0 %v796
    %v815 = vpop.f32.mrf.mxu0
    %v816 = vadd.f32 0.0, %v815
    %817 = vdwg.mxu0
    %818 = vmatpush.msra.mxu0 0.0
    %819 = vmatpush.msra.mxu0 0.0
    %820 = vmatpush.msra.mxu0 0.0
    %821 = vmatpush.msra.mxu0 0.0
    %822 = vmatpush.msra.mxu0 0.0
    %823 = vmatpush.msra.mxu0 0.0
    %824 = vmatpush.msra.mxu0 0.0
    %825 = vmatpush.msra.mxu0 0.0
    %826 = vmatpush.msra.mxu0 0.0
    %827 = vmatpush.msra.mxu0 0.0
    %828 = vmatpush.msra.mxu0 0.0
    %829 = vmatpush.msra.mxu0 0.0
    %830 = vmatpush.msra.mxu0 0.0
    %831 = vmatpush.msra.mxu0 0.0
    %832 = vmatpush.msra.mxu0 0.0
    %833 = vmatpush.msra.mxu0 %v792
    %834 = vmatmul.f32.gmra.mxu0 %v796
    %v835 = vpop.f32.mrf.mxu0
    %v836 = vadd.f32 0.0, %v835
    %837 = vdwg.mxu0
    %v838 = vadd.f32 %v783, %v816
    %v839 = vadd.f32 %v784, %v836
    %s840 = scalar_lea.vmem %s4, 32
    %v841 = vld [vmem:[%s840] sm:$0xff]
    %v843 = vsel %vm84, %v841, 0
    %845 = vmatpush.msra.mxu0 0.0
    %846 = vmatpush.msra.mxu0 0.0
    %847 = vmatpush.msra.mxu0 0.0
    %848 = vmatpush.msra.mxu0 0.0
    %849 = vmatpush.msra.mxu0 0.0
    %850 = vmatpush.msra.mxu0 0.0
    %851 = vmatpush.msra.mxu0 0.0
    %852 = vmatpush.msra.mxu0 0.0
    %853 = vmatpush.msra.mxu0 0.0
    %854 = vmatpush.msra.mxu0 0.0
    %855 = vmatpush.msra.mxu0 0.0
    %856 = vmatpush.msra.mxu0 0.0
    %857 = vmatpush.msra.mxu0 0.0
    %858 = vmatpush.msra.mxu0 0.0
    %859 = vmatpush.msra.mxu0 0.0
    %860 = vmatpush.msra.mxu0 %v623
    %861 = vmatmul.f32.gmra.mxu0 %v843
    %v862 = vpop.f32.mrf.mxu0
    %v863 = vadd.f32 0.0, %v862
    %864 = vdwg.mxu0
    %865 = vmatpush.msra.mxu0 0.0
    %866 = vmatpush.msra.mxu0 0.0
    %867 = vmatpush.msra.mxu0 0.0
    %868 = vmatpush.msra.mxu0 0.0
    %869 = vmatpush.msra.mxu0 0.0
    %870 = vmatpush.msra.mxu0 0.0
    %871 = vmatpush.msra.mxu0 0.0
    %872 = vmatpush.msra.mxu0 0.0
    %873 = vmatpush.msra.mxu0 0.0
    %874 = vmatpush.msra.mxu0 0.0
    %875 = vmatpush.msra.mxu0 0.0
    %876 = vmatpush.msra.mxu0 0.0
    %877 = vmatpush.msra.mxu0 0.0
    %878 = vmatpush.msra.mxu0 0.0
    %879 = vmatpush.msra.mxu0 0.0
    %880 = vmatpush.msra.mxu0 %v624
    %881 = vmatmul.f32.gmra.mxu0 %v843
    %v882 = vpop.f32.mrf.mxu0
    %v883 = vadd.f32 0.0, %v882
    %884 = vdwg.mxu0
    %v885 = vadd.f32 %v838, %v863
    %v886 = vadd.f32 %v839, %v883
    %887 = vrot.lane.b32.xlu0 %v623, 127
    %v888 = vpop.permute.xlu0 %887
    %889 = vrot.lane.b32.xlu0 %v624, 127
    %v890 = vpop.permute.xlu0 %889
    %v891 = vsel %vm344, %v888, %v890
    %v892 = vsel %vm344, %v890, %v888
    %v893 = vmul.f32 %v891, %v348
    %v894 = vmul.f32 %v892, %v349
    %s895 = scalar_lea.vmem %s4, 40
    %v896 = vld [vmem:[%s895] sm:$0xff]
    %v898 = vsel %vm84, %v896, 0
    %900 = vmatpush.msra.mxu0 0.0
    %901 = vmatpush.msra.mxu0 0.0
    %902 = vmatpush.msra.mxu0 0.0
    %903 = vmatpush.msra.mxu0 0.0
    %904 = vmatpush.msra.mxu0 0.0
    %905 = vmatpush.msra.mxu0 0.0
    %906 = vmatpush.msra.mxu0 0.0
    %907 = vmatpush.msra.mxu0 0.0
    %908 = vmatpush.msra.mxu0 0.0
    %909 = vmatpush.msra.mxu0 0.0
    %910 = vmatpush.msra.mxu0 0.0
    %911 = vmatpush.msra.mxu0 0.0
    %912 = vmatpush.msra.mxu0 0.0
    %913 = vmatpush.msra.mxu0 0.0
    %914 = vmatpush.msra.mxu0 0.0
    %915 = vmatpush.msra.mxu0 %v893
    %916 = vmatmul.f32.gmra.mxu0 %v898
    %v917 = vpop.f32.mrf.mxu0
    %v918 = vadd.f32 0.0, %v917
    %919 = vdwg.mxu0
    %920 = vmatpush.msra.mxu0 0.0
    %921 = vmatpush.msra.mxu0 0.0
    %922 = vmatpush.msra.mxu0 0.0
    %923 = vmatpush.msra.mxu0 0.0
    %924 = vmatpush.msra.mxu0 0.0
    %925 = vmatpush.msra.mxu0 0.0
    %926 = vmatpush.msra.mxu0 0.0
    %927 = vmatpush.msra.mxu0 0.0
    %928 = vmatpush.msra.mxu0 0.0
    %929 = vmatpush.msra.mxu0 0.0
    %930 = vmatpush.msra.mxu0 0.0
    %931 = vmatpush.msra.mxu0 0.0
    %932 = vmatpush.msra.mxu0 0.0
    %933 = vmatpush.msra.mxu0 0.0
    %934 = vmatpush.msra.mxu0 0.0
    %935 = vmatpush.msra.mxu0 %v894
    %936 = vmatmul.f32.gmra.mxu0 %v898
    %v937 = vpop.f32.mrf.mxu0
    %v938 = vadd.f32 0.0, %v937
    %939 = vdwg.mxu0
    %v940 = vadd.f32 %v885, %v918
    %v941 = vadd.f32 %v886, %v938
    %942 = vrot.lane.b32.xlu0 %v623, 113
    %v943 = vpop.permute.xlu0 %942
    %944 = vrot.lane.b32.xlu0 %v624, 113
    %v945 = vpop.permute.xlu0 %944
    %v946 = vsel %vm405, %v943, %v945
    %v947 = vsel %vm405, %v945, %v943
    %v948 = vmul.f32 %v946, %v409
    %v949 = vmul.f32 %v947, %v410
    %s950 = scalar_lea.vmem %s4, 48
    %v951 = vld [vmem:[%s950] sm:$0xff]
    %v953 = vsel %vm84, %v951, 0
    %955 = vmatpush.msra.mxu0 0.0
    %956 = vmatpush.msra.mxu0 0.0
    %957 = vmatpush.msra.mxu0 0.0
    %958 = vmatpush.msra.mxu0 0.0
    %959 = vmatpush.msra.mxu0 0.0
    %960 = vmatpush.msra.mxu0 0.0
    %961 = vmatpush.msra.mxu0 0.0
    %962 = vmatpush.msra.mxu0 0.0
    %963 = vmatpush.msra.mxu0 0.0
    %964 = vmatpush.msra.mxu0 0.0
    %965 = vmatpush.msra.mxu0 0.0
    %966 = vmatpush.msra.mxu0 0.0
    %967 = vmatpush.msra.mxu0 0.0
    %968 = vmatpush.msra.mxu0 0.0
    %969 = vmatpush.msra.mxu0 0.0
    %970 = vmatpush.msra.mxu0 %v948
    %971 = vmatmul.f32.gmra.mxu0 %v953
    %v972 = vpop.f32.mrf.mxu0
    %v973 = vadd.f32 0.0, %v972
    %974 = vdwg.mxu0
    %975 = vmatpush.msra.mxu0 0.0
    %976 = vmatpush.msra.mxu0 0.0
    %977 = vmatpush.msra.mxu0 0.0
    %978 = vmatpush.msra.mxu0 0.0
    %979 = vmatpush.msra.mxu0 0.0
    %980 = vmatpush.msra.mxu0 0.0
    %981 = vmatpush.msra.mxu0 0.0
    %982 = vmatpush.msra.mxu0 0.0
    %983 = vmatpush.msra.mxu0 0.0
    %984 = vmatpush.msra.mxu0 0.0
    %985 = vmatpush.msra.mxu0 0.0
    %986 = vmatpush.msra.mxu0 0.0
    %987 = vmatpush.msra.mxu0 0.0
    %988 = vmatpush.msra.mxu0 0.0
    %989 = vmatpush.msra.mxu0 0.0
    %990 = vmatpush.msra.mxu0 %v949
    %991 = vmatmul.f32.gmra.mxu0 %v953
    %v992 = vpop.f32.mrf.mxu0
    %v993 = vadd.f32 0.0, %v992
    %994 = vdwg.mxu0
    %v995 = vadd.f32 %v940, %v973
    %v996 = vadd.f32 %v941, %v993
    %997 = vrot.lane.b32.xlu0 %v623, 112
    %v998 = vpop.permute.xlu0 %997
    %999 = vrot.lane.b32.xlu0 %v624, 112
    %v1000 = vpop.permute.xlu0 %999
    %v1001 = vsel %vm466, %v998, %v1000
    %v1002 = vsel %vm466, %v1000, %v998
    %v1003 = vmul.f32 %v1001, %v470
    %v1004 = vmul.f32 %v1002, %v471
    %s1005 = scalar_lea.vmem %s4, 56
    %v1006 = vld [vmem:[%s1005] sm:$0xff]
    %v1008 = vsel %vm84, %v1006, 0
    %1010 = vmatpush.msra.mxu0 0.0
    %1011 = vmatpush.msra.mxu0 0.0
    %1012 = vmatpush.msra.mxu0 0.0
    %1013 = vmatpush.msra.mxu0 0.0
    %1014 = vmatpush.msra.mxu0 0.0
    %1015 = vmatpush.msra.mxu0 0.0
    %1016 = vmatpush.msra.mxu0 0.0
    %1017 = vmatpush.msra.mxu0 0.0
    %1018 = vmatpush.msra.mxu0 0.0
    %1019 = vmatpush.msra.mxu0 0.0
    %1020 = vmatpush.msra.mxu0 0.0
    %1021 = vmatpush.msra.mxu0 0.0
    %1022 = vmatpush.msra.mxu0 0.0
    %1023 = vmatpush.msra.mxu0 0.0
    %1024 = vmatpush.msra.mxu0 0.0
    %1025 = vmatpush.msra.mxu0 %v1003
    %1026 = vmatmul.f32.gmra.mxu0 %v1008
    %v1027 = vpop.f32.mrf.mxu0
    %v1028 = vadd.f32 0.0, %v1027
    %1029 = vdwg.mxu0
    %1030 = vmatpush.msra.mxu0 0.0
    %1031 = vmatpush.msra.mxu0 0.0
    %1032 = vmatpush.msra.mxu0 0.0
    %1033 = vmatpush.msra.mxu0 0.0
    %1034 = vmatpush.msra.mxu0 0.0
    %1035 = vmatpush.msra.mxu0 0.0
    %1036 = vmatpush.msra.mxu0 0.0
    %1037 = vmatpush.msra.mxu0 0.0
    %1038 = vmatpush.msra.mxu0 0.0
    %1039 = vmatpush.msra.mxu0 0.0
    %1040 = vmatpush.msra.mxu0 0.0
    %1041 = vmatpush.msra.mxu0 0.0
    %1042 = vmatpush.msra.mxu0 0.0
    %1043 = vmatpush.msra.mxu0 0.0
    %1044 = vmatpush.msra.mxu0 0.0
    %1045 = vmatpush.msra.mxu0 %v1004
    %1046 = vmatmul.f32.gmra.mxu0 %v1008
    %v1047 = vpop.f32.mrf.mxu0
    %v1048 = vadd.f32 0.0, %v1047
    %1049 = vdwg.mxu0
    %v1050 = vadd.f32 %v995, %v1028
    %v1051 = vadd.f32 %v996, %v1048
    %1052 = vrot.lane.b32.xlu0 %v623, 111
    %v1053 = vpop.permute.xlu0 %1052
    %1054 = vrot.lane.b32.xlu0 %v624, 111
    %v1055 = vpop.permute.xlu0 %1054
    %v1056 = vsel %vm527, %v1053, %v1055
    %v1057 = vsel %vm527, %v1055, %v1053
    %v1058 = vmul.f32 %v1056, %v531
    %v1059 = vmul.f32 %v1057, %v532
    %s1060 = scalar_lea.vmem %s4, 64
    %v1061 = vld [vmem:[%s1060] sm:$0xff]
    %v1063 = vsel %vm84, %v1061, 0
    %1065 = vmatpush.msra.mxu0 0.0
    %1066 = vmatpush.msra.mxu0 0.0
    %1067 = vmatpush.msra.mxu0 0.0
    %1068 = vmatpush.msra.mxu0 0.0
    %1069 = vmatpush.msra.mxu0 0.0
    %1070 = vmatpush.msra.mxu0 0.0
    %1071 = vmatpush.msra.mxu0 0.0
    %1072 = vmatpush.msra.mxu0 0.0
    %1073 = vmatpush.msra.mxu0 0.0
    %1074 = vmatpush.msra.mxu0 0.0
    %1075 = vmatpush.msra.mxu0 0.0
    %1076 = vmatpush.msra.mxu0 0.0
    %1077 = vmatpush.msra.mxu0 0.0
    %1078 = vmatpush.msra.mxu0 0.0
    %1079 = vmatpush.msra.mxu0 0.0
    %1080 = vmatpush.msra.mxu0 %v1058
    %1081 = vmatmul.f32.gmra.mxu0 %v1063
    %v1082 = vpop.f32.mrf.mxu0
    %v1083 = vadd.f32 0.0, %v1082
    %1084 = vdwg.mxu0
    %1085 = vmatpush.msra.mxu0 0.0
    %1086 = vmatpush.msra.mxu0 0.0
    %1087 = vmatpush.msra.mxu0 0.0
    %1088 = vmatpush.msra.mxu0 0.0
    %1089 = vmatpush.msra.mxu0 0.0
    %1090 = vmatpush.msra.mxu0 0.0
    %1091 = vmatpush.msra.mxu0 0.0
    %1092 = vmatpush.msra.mxu0 0.0
    %1093 = vmatpush.msra.mxu0 0.0
    %1094 = vmatpush.msra.mxu0 0.0
    %1095 = vmatpush.msra.mxu0 0.0
    %1096 = vmatpush.msra.mxu0 0.0
    %1097 = vmatpush.msra.mxu0 0.0
    %1098 = vmatpush.msra.mxu0 0.0
    %1099 = vmatpush.msra.mxu0 0.0
    %1100 = vmatpush.msra.mxu0 %v1059
    %1101 = vmatmul.f32.gmra.mxu0 %v1063
    %v1102 = vpop.f32.mrf.mxu0
    %v1103 = vadd.f32 0.0, %v1102
    %1104 = vdwg.mxu0
    %v1105 = vadd.f32 %v1050, %v1083
    %v1106 = vadd.f32 %v1051, %v1103
    %v1107 = vadd.f32 %v1105, %v1106
    %1108 = vadd.xlane.f32.xlu0 %v1107
    %v1109 = vpop.xlane.xlu0 %1108
    %v1110 = vmul.f32 %v1109, 0.00390625
    %v1111 = vsub.f32 %v1105, %v1110
    %v1112 = vsub.f32 %v1106, %v1110
    %v1113 = vmul.f32 %v1111, %v1111
    %v1114 = vmul.f32 %v1112, %v1112
    %v1115 = vadd.f32 %v1113, %v1114
    %1116 = vadd.xlane.f32.xlu0 %v1115
    %v1117 = vpop.xlane.xlu0 %1116
    %v1118 = vmul.f32 %v1117, 0.00390625
    %v1119 = vadd.f32 %v1118, 1e-05
    %v1120 = vrsqrt.pop %v1119
    %v1121 = vmul.f32 %v1120, %v1119
    %v1122 = vmul.f32 %v1121, %v1120
    %v1123 = vmul.f32 0.5, %v1122
    %v1124 = vsub.f32 1.5, %v1123
    %v1125 = vmul.f32 %v1120, %v1124
    %vm1126 = vweird.f32 %v1119
    %vm1127 = vweird.f32 %v1120
    %vm1128 = vmor %vm1126, %vm1127
    %v1129 = vsel %vm1128, %v1120, %v1125
    %v1130 = vmul.f32 %v1111, %v1129
    %v1131 = vmul.f32 %v1112, %v1129
    %1133 = vset.pattern.permute.xlu0 0
    %1134 = vperm.xlu0 %1133, %v34
    %v1135 = vpop.permute.xlu0 %1134
    %v1137 = vmul.f32 %v1130, %v1135
    %v1138 = vmul.f32 %v1131, %v1135
    %1140 = vset.pattern.permute.xlu0 0
    %1141 = vperm.xlu0 %1140, %v35
    %v1142 = vpop.permute.xlu0 %1141
    %v1144 = vadd.f32 %v1137, %v1142
    %v1145 = vadd.f32 %v1138, %v1142
    %v1146 = vadd.f32 %v1144, %v30
    %v1147 = vadd.f32 %v1145, %v31
    %1148 = vst [vmem:[#allocation2] sm:$0xff] %v1146
    %1149 = vst [vmem:[#allocation2 + $0x8] sm:$0xff] %v1147
    // Predicated region
    $region34: #{tpu_custom_call.1} parent=1 // pred_check
      _
    $region35: #{tpu_custom_call.1} parent=1 // pred_check_branch
      %1151 = sbr.rel (0) target = $region37
    $region36: #{tpu_custom_call.1} parent=1 // pred_region
      %1153 = vsyncadd [#allocation3], 0
      %s1155 = sshll.u32 [#allocation2], 4
      %s1156 = int_to_ptr.vmem [resolvable:$true] %s1155
      %s1157 = sshll.u32 %s8, 4
      %s1158 = int_to_ptr.hbm [resolvable:$true] %s1157
      %1160 = dma.vmem_to_hbm [thread:$0]  %s1156, 256, %s1158, [#allocation3]
    $region37: #{tpu_custom_call.1} parent=1 // pred_fallthru
      _
    // Predicated region
    $region38: #{tpu_custom_call.1} parent=1 // pred_check
      _
    $region39: #{tpu_custom_call.1} parent=1 // pred_check_branch
      %1162 = sbr.rel (0) target = $region41
    $region40: #{tpu_custom_call.1} parent=1 // pred_region
      %1164 = dma.done [#allocation3], 256
    $region41: #{tpu_custom_call.1} parent=1 // pred_fallthru
      _
    %1165 = vsyncpa [#allocation3], 1

</llo_original>
